<compile_context>
chip_gen: v7x
topology: tpu7x:2x2x1
jax: 0.10.0
libtpu: 0.0.40
codegen_flags: <defaults>
</compile_context>

<pallas_src>
import functools

import numpy as np
import jax
import jax.numpy as jnp
from jax.experimental import pallas as pl
from jax.experimental.pallas import tpu as pltpu


# ------------------------------- helpers -------------------------------------

def _round_up(x, m):
    return (x + m - 1) // m * m


def _choose_tile_b(b):
    """Batch tile: up to 512 rows, multiple of 8, >=2 grid steps when possible."""
    b8 = _round_up(b, 8)
    if b8 <= 16:
        return b8                      # tiny batch: one small tile
    for tile in (512, 256, 128, 64, 32, 16, 8):
        if tile * 2 <= b8:             # guarantees >= 2 grid steps (megacore)
            return tile
    return b8


def _argmax_last(x):
    """First-index argmax over the last axis, keepdims, int32 (matches torch.max)."""
    mx = jnp.max(x, axis=-1, keepdims=True)
    idx = jax.lax.broadcasted_iota(jnp.int32, x.shape, dimension=x.ndim - 1)
    big = jnp.int32(x.shape[-1])
    cand = jnp.where(x == mx, idx, big)
    return jnp.min(cand, axis=-1, keepdims=True).astype(jnp.int32)


# ----------------------------- Pallas kernel ----------------------------------
#
# Bias packing (single [8,128] f32 operand):
#   row 0: bc1_eff [hid_c]    row 1: bc2 [num_classes]
#   row 2: bs1_eff [hid_s]    row 3: bs2 [2]

def _pipeline_kernel(*refs, with_spectrum, adv_cls_label):
    if with_spectrum:
        (spec_ref, ws1_ref, ws2_ref,
         ximg_ref, wc1_ref, wc2_ref, bias_ref, out_ref) = refs
    else:
        (ximg_ref, wc1_ref, wc2_ref, bias_ref, out_ref) = refs

    # --- classifier branch (bf16 MXU, f32 accumulation) -----------------------
    hid_c = wc1_ref.shape[1]
    nc = wc2_ref.shape[1]
    bc1 = bias_ref[0:1, 0:hid_c]                     # static slices: zero cost
    bc2 = bias_ref[1:2, 0:nc]

    h2 = jnp.dot(ximg_ref[...], wc1_ref[...],
                 preferred_element_type=jnp.float32) + bc1
    h2 = jnp.maximum(h2, 0.0)
    logits_c = jnp.dot(h2.astype(jnp.bfloat16), wc2_ref[...],
                       preferred_element_type=jnp.float32) + bc2
    # softmax dropped: strictly monotone => argmax(softmax(x)) == argmax(x)
    label_classifier = _argmax_last(logits_c)        # [TILE_B, 1] int32

    # --- spectrum branch: only built when method == 2 --------------------------
    if with_spectrum:
        hid_s = ws1_ref.shape[1]
        ns = ws2_ref.shape[1]
        bs1 = bias_ref[2:3, 0:hid_s]
        bs2 = bias_ref[3:4, 0:ns]

        hs = jnp.dot(spec_ref[...], ws1_ref[...],
                     preferred_element_type=jnp.float32) + bs1
        hs = jnp.maximum(hs, 0.0)
        logits_s = jnp.dot(hs, ws2_ref[...],
                           preferred_element_type=jnp.float32) + bs2
        label_spectrum = _argmax_last(logits_s)      # [TILE_B, 1] int32
        out = jnp.where(label_spectrum == 1,
                        jnp.int32(adv_cls_label), label_classifier)
    else:
        out = label_classifier

    # Lane-dense store: broadcast the per-row label across all 128 lanes so the
    # writeback is a full (unmasked) vector store; wrapper reads column 0.
    out_ref[...] = jnp.broadcast_to(out, out_ref.shape)


# ------------------------------- JAX glue --------------------------------------

def _spectrum_log_magnitude(x):
    """img_spectrum_analyzer front-end: grayscale -> FFT2 -> shift -> 20*log|F|."""
    gray = jnp.mean(x, axis=1)                                  # [B, H, W]
    f = jnp.fft.fftshift(jnp.fft.fft2(gray), axes=(-2, -1))
    return 20.0 * jnp.log(jnp.abs(f) + 1e-8)                    # [B, H, W]


def _make_bin_matrix(h, w, nbins):
    """Azimuthal-average binning matrix: [H*W, nbins], column k averages radius-k ring."""
    cy, cx = (h - 1) / 2.0, (w - 1) / 2.0
    yy, xx = np.mgrid[0:h, 0:w]
    r = np.sqrt((yy - cy) ** 2 + (xx - cx) ** 2)
    b = np.floor(r).astype(np.int32).reshape(-1)
    mat = np.zeros((h * w, nbins), np.float32)
    for k in range(nbins):
        mask = b == k
        cnt = int(mask.sum())
        if cnt:
            mat[mask, k] = 1.0 / cnt
    return jnp.asarray(mat)


def _fft_lowpass(x, radius=6.0):
    # TODO(synk): exact img_transformer(8, 0, 6) block-DCT semantics unavailable;
    #             approximated with a centered FFT low-pass (radius 6) per channel.
    h, w = x.shape[-2:]
    cy, cx = (h - 1) / 2.0, (w - 1) / 2.0
    yy, xx = np.mgrid[0:h, 0:w]
    mask = (np.sqrt((yy - cy) ** 2 + (xx - cx) ** 2) <= radius).astype(np.float32)
    f = jnp.fft.fftshift(jnp.fft.fft2(x, axes=(-2, -1)), axes=(-2, -1))
    f = f * jnp.asarray(mask)
    return jnp.real(jnp.fft.ifft2(jnp.fft.ifftshift(f, axes=(-2, -1)), axes=(-2, -1)))


# ----------------------------- Module wrapper -----------------------------------

class ProactiverAndReactiverPallas:
    """cifar-10 configuration of proactiver_and_reactiver with synthetic weights."""

    SPEC_LANES = 128   # lane-padded width of the binned-spectrum operand

    def __init__(self, key, img_size=32, channels=3):
        self.img_size = img_size
        self.channels = channels
        self.num_classes = 10
        self.spectrum_size = img_size // 2          # 16 for 32x32
        self.spectrum_mean_std = (0.0, 1.0)
        self.adv_cls_label = 11

        hid_s, hid_c = 32, 64
        ks = jax.random.split(key, 8)
        s = 0.1
        ws1 = s * jax.random.normal(ks[0], (self.spectrum_size, hid_s), jnp.float32)
        bs1 = s * jax.random.normal(ks[1], (hid_s,), jnp.float32)
        ws2 = s * jax.random.normal(ks[2], (hid_s, 2), jnp.float32)
        bs2 = s * jax.random.normal(ks[3], (2,), jnp.float32)

        d_in = channels * img_size * img_size
        wc1 = s * jax.random.normal(ks[4], (d_in, hid_c), jnp.float32)
        bc1 = s * jax.random.normal(ks[5], (hid_c,), jnp.float32)
        wc2 = s * jax.random.normal(ks[6], (hid_c, self.num_classes), jnp.float32)
        bc2 = s * jax.random.normal(ks[7], (self.num_classes,), jnp.float32)

        # Azimuthal binning stays in the XLA glue (K=16 inside the kernel, not 1024).
        self.bin_mat = _make_bin_matrix(img_size, img_size, self.spectrum_size)

        # --- algebraic folding (done once, in f32) -----------------------------
        # spectrum:  ((spec_binned - mean)/std) @ ws1 + bs1
        #          = spec_binned @ (ws1/std) + (bs1 - mean/std * colsum(ws1))
        spec_mean, spec_std = self.spectrum_mean_std
        ws1_eff = ws1 / spec_std
        bs1_eff = bs1 - (spec_mean / spec_std) * jnp.sum(ws1, axis=0)
        # classifier: ((x - 0.5)/0.5) @ wc1 + bc1 = x @ (2*wc1) + (bc1 - colsum(wc1))
        wc1_eff = 2.0 * wc1
        bc1_eff = bc1 - jnp.sum(wc1, axis=0)

        # Spectrum branch kept in f32 (tiny; avoids bf16 decision flips on the
        # wide-dynamic-range log-magnitude features).  ws1 lane-padded to 128 rows
        # to match the lane-padded spectrum operand.
        ws1_pad = jnp.zeros((self.SPEC_LANES, hid_s), jnp.float32)
        self.ws1 = ws1_pad.at[: self.spectrum_size, :].set(ws1_eff)
        self.ws2 = ws2

        # Classifier weights in bf16 (native MXU path), biases stay f32.
        self.wc1 = wc1_eff.astype(jnp.bfloat16)
        self.wc2 = wc2.astype(jnp.bfloat16)

        # Consolidated bias operand [8, 128] f32 (single resident tile).
        biases = jnp.zeros((8, 128), jnp.float32)
        biases = biases.at[0, :hid_c].set(bc1_eff)
        biases = biases.at[1, :self.num_classes].set(bc2)
        biases = biases.at[2, :hid_s].set(bs1_eff)
        biases = biases.at[3, :2].set(bs2)
        self.biases = biases

    def __call__(self, x, method, spectrum_classifier):
        assert x.shape[-2] == x.shape[-1]
        if spectrum_classifier != 'cnn':
            # 'adb' / 'svm' require external joblib models — not representable here.
            raise NotImplementedError("only the 'cnn' spectrum classifier is implemented")
        method = int(method)
        with_spectrum = (method == 2)   # spectrum only affects output when method==2

        b, c, h, w = x.shape
        tile_b = _choose_tile_b(b)
        b_pad = _round_up(b, tile_b)
        num_tiles = b_pad // tile_b

        # --- classifier input (optional FFT low-pass preprocessing) ------------
        xc = _fft_lowpass(x) if method != 0 else x
        ximg = xc.astype(jnp.float32).reshape(b, c * h * w)
        if b_pad != b:
            ximg = jnp.pad(ximg, ((0, b_pad - b), (0, 0)))
        ximg = ximg.astype(jnp.bfloat16)

        def row_spec(feat):                               # batch-tiled activations
            return pl.BlockSpec((tile_b, feat), lambda i: (i, 0))

        def resident(shape):                              # weights: constant block
            return pl.BlockSpec(shape, lambda i: tuple(0 for _ in shape))

        if with_spectrum:
            # --- spectrum front-end: FFT log-magnitude + azimuthal binning (XLA)
            spec_img = _spectrum_log_magnitude(x).reshape(b, h * w)
            spec_binned = spec_img @ self.bin_mat                       # [b, 16]
            spec_pad = jnp.pad(
                spec_binned,
                ((0, b_pad - b), (0, self.SPEC_LANES - self.spectrum_size)),
            ).astype(jnp.float32)

            operands = (spec_pad, self.ws1, self.ws2,
                        ximg, self.wc1, self.wc2, self.biases)
            in_specs = [row_spec(self.SPEC_LANES),
                        resident(self.ws1.shape), resident(self.ws2.shape),
                        row_spec(c * h * w),
                        resident(self.wc1.shape), resident(self.wc2.shape),
                        resident(self.biases.shape)]
        else:
            operands = (ximg, self.wc1, self.wc2, self.biases)
            in_specs = [row_spec(c * h * w),
                        resident(self.wc1.shape), resident(self.wc2.shape),
                        resident(self.biases.shape)]

        kernel = functools.partial(
            _pipeline_kernel,
            with_spectrum=with_spectrum,
            adv_cls_label=self.adv_cls_label,
        )

        out = pl.pallas_call(
            kernel,
            out_shape=jax.ShapeDtypeStruct((b_pad, 128), jnp.int32),
            grid=(num_tiles,),
            in_specs=in_specs,
            out_specs=pl.BlockSpec((tile_b, 128), lambda i: (i, 0)),
            compiler_params=pltpu.CompilerParams(
                dimension_semantics=("parallel",),
                vmem_limit_bytes=32 * 1024 * 1024),
        )(*operands)
        return out[:b, 0]


# ---------------------------------- main ----------------------------------------

if __name__ == "__main__":
    key = jax.random.PRNGKey(0)
    k_param, k_data = jax.random.split(key)

    B, C, H, W = 2, 3, 32, 32            # cifar-10 sized, small batch
    x = jax.random.uniform(k_data, (B, C, H, W), jnp.float32)   # clip_values (0, 1)

    model = ProactiverAndReactiverPallas(k_param, img_size=H, channels=C)

    # method == 2: full pipeline (spectrum branch + reactive label replacement)
    labels2 = jax.block_until_ready(model(x, method=2, spectrum_classifier='cnn'))
    assert labels2.shape == (B,)
    assert bool(jnp.all((labels2 == 11) | ((labels2 >= 0) & (labels2 < 10))))

    # method == 0: statically specialized classifier-only kernel
    labels0 = jax.block_until_ready(model(x, method=0, spectrum_classifier='cnn'))
    assert labels0.shape == (B,)
    assert bool(jnp.all((labels0 >= 0) & (labels0 < 10)))

    print("KERNEL_OK")
</pallas_src>

<mosaic_0001>
module attributes {stable_mosaic.version = 11 : i64} {
  func.func @_pipeline_kernel(%arg0: i32, %arg1: memref<8x128xf32, #tpu.memory_space<vmem>>, %arg2: memref<128x32xf32, #tpu.memory_space<vmem>>, %arg3: memref<32x2xf32, #tpu.memory_space<vmem>>, %arg4: memref<8x3072xbf16, #tpu.memory_space<vmem>>, %arg5: memref<3072x64xbf16, #tpu.memory_space<vmem>>, %arg6: memref<64x10xbf16, #tpu.memory_space<vmem>>, %arg7: memref<8x128xf32, #tpu.memory_space<vmem>>, %arg8: memref<8x128xi32, #tpu.memory_space<vmem>>) attributes {dimension_semantics = [#tpu.dimension_semantics<parallel>], iteration_bounds = array<i64: 1>, scalar_prefetch = 0 : i64, scratch_operands = 0 : i64, tpu.core_type = #tpu.core_type<tc>, window_params = [{transform_indices = @transform_0, window_bounds = array<i64: 8, 128>}, {pipeline_mode = #tpu.pipeline_mode<synchronous>, transform_indices = @transform_1, window_bounds = array<i64: 128, 32>}, {pipeline_mode = #tpu.pipeline_mode<synchronous>, transform_indices = @transform_2, window_bounds = array<i64: 32, 2>}, {transform_indices = @transform_3, window_bounds = array<i64: 8, 3072>}, {pipeline_mode = #tpu.pipeline_mode<synchronous>, transform_indices = @transform_4, window_bounds = array<i64: 3072, 64>}, {pipeline_mode = #tpu.pipeline_mode<synchronous>, transform_indices = @transform_5, window_bounds = array<i64: 64, 10>}, {pipeline_mode = #tpu.pipeline_mode<synchronous>, transform_indices = @transform_6, window_bounds = array<i64: 8, 128>}, {transform_indices = @transform_7, window_bounds = array<i64: 8, 128>}]} {
    %c0 = arith.constant 0 : index
    %c0_0 = arith.constant 0 : index
    %0 = vector.load %arg7[%c0, %c0_0] : memref<8x128xf32, #tpu.memory_space<vmem>>, vector<1x64xf32>
    %c1 = arith.constant 1 : index
    %c0_1 = arith.constant 0 : index
    %1 = vector.load %arg7[%c1, %c0_1] : memref<8x128xf32, #tpu.memory_space<vmem>>, vector<1x10xf32>
    %c0_2 = arith.constant 0 : index
    %c0_3 = arith.constant 0 : index
    %2 = vector.load %arg4[%c0_2, %c0_3] : memref<8x3072xbf16, #tpu.memory_space<vmem>>, vector<8x3072xbf16>
    %c0_4 = arith.constant 0 : index
    %c0_5 = arith.constant 0 : index
    %3 = vector.load %arg5[%c0_4, %c0_5] : memref<3072x64xbf16, #tpu.memory_space<vmem>>, vector<3072x64xbf16>
    %cst = arith.constant dense<0.000000e+00> : vector<8x64xf32>
    %4 = tpu.matmul %2, %3, %cst {dimension_numbers = #tpu.dot_dimension_numbers<[1], [0], [0], [1], [0, 0, 1, 1], [], []>} : vector<8x3072xbf16>, vector<3072x64xbf16>, vector<8x64xf32> -> vector<8x64xf32>
    %5 = vector.broadcast %0 : vector<1x64xf32> to vector<8x64xf32>
    %6 = arith.addf %4, %5 : vector<8x64xf32>
    %cst_6 = arith.constant 0.000000e+00 : f32
    %7 = vector.broadcast %cst_6 : f32 to vector<8x64xf32>
    %8 = arith.maximumf %6, %7 : vector<8x64xf32>
    %9 = arith.truncf %8 : vector<8x64xf32> to vector<8x64xbf16>
    %c0_7 = arith.constant 0 : index
    %c0_8 = arith.constant 0 : index
    %10 = vector.load %arg6[%c0_7, %c0_8] : memref<64x10xbf16, #tpu.memory_space<vmem>>, vector<64x10xbf16>
    %cst_9 = arith.constant dense<0.000000e+00> : vector<8x10xf32>
    %11 = tpu.matmul %9, %10, %cst_9 {dimension_numbers = #tpu.dot_dimension_numbers<[1], [0], [0], [1], [0, 0, 1, 1], [], []>} : vector<8x64xbf16>, vector<64x10xbf16>, vector<8x10xf32> -> vector<8x10xf32>
    %12 = vector.broadcast %1 : vector<1x10xf32> to vector<8x10xf32>
    %13 = arith.addf %11, %12 : vector<8x10xf32>
    %cst_10 = arith.constant dense<0xFF800000> : vector<8xf32>
    %14 = vector.multi_reduction <maximumf>, %13, %cst_10 [1] : vector<8x10xf32> to vector<8xf32>
    %15 = vector.shape_cast %14 : vector<8xf32> to vector<8x1xf32>
    %16 = tpu.iota {dimensions = array<i32: 1>} : vector<8x10xi32>
    %17 = vector.broadcast %15 : vector<8x1xf32> to vector<8x10xf32>
    %18 = arith.cmpf oeq, %13, %17 : vector<8x10xf32>
    %c10_i32 = arith.constant 10 : i32
    %19 = vector.broadcast %c10_i32 : i32 to vector<8x10xi32>
    %20 = arith.select %18, %16, %19 : vector<8x10xi1>, vector<8x10xi32>
    %cst_11 = arith.constant dense<2147483647> : vector<8xi32>
    %21 = vector.multi_reduction <minsi>, %20, %cst_11 [1] : vector<8x10xi32> to vector<8xi32>
    %22 = vector.shape_cast %21 : vector<8xi32> to vector<8x1xi32>
    %c2 = arith.constant 2 : index
    %c0_12 = arith.constant 0 : index
    %23 = vector.load %arg7[%c2, %c0_12] : memref<8x128xf32, #tpu.memory_space<vmem>>, vector<1x32xf32>
    %c3 = arith.constant 3 : index
    %c0_13 = arith.constant 0 : index
    %24 = vector.load %arg7[%c3, %c0_13] : memref<8x128xf32, #tpu.memory_space<vmem>>, vector<1x2xf32>
    %c0_14 = arith.constant 0 : index
    %c0_15 = arith.constant 0 : index
    %25 = vector.load %arg1[%c0_14, %c0_15] : memref<8x128xf32, #tpu.memory_space<vmem>>, vector<8x128xf32>
    %c0_16 = arith.constant 0 : index
    %c0_17 = arith.constant 0 : index
    %26 = vector.load %arg2[%c0_16, %c0_17] : memref<128x32xf32, #tpu.memory_space<vmem>>, vector<128x32xf32>
    %cst_18 = arith.constant dense<0.000000e+00> : vector<8x32xf32>
    %27 = tpu.matmul %25, %26, %cst_18 {dimension_numbers = #tpu.dot_dimension_numbers<[1], [0], [0], [1], [0, 0, 1, 1], [], []>} : vector<8x128xf32>, vector<128x32xf32>, vector<8x32xf32> -> vector<8x32xf32>
    %28 = vector.broadcast %23 : vector<1x32xf32> to vector<8x32xf32>
    %29 = arith.addf %27, %28 : vector<8x32xf32>
    %cst_19 = arith.constant 0.000000e+00 : f32
    %30 = vector.broadcast %cst_19 : f32 to vector<8x32xf32>
    %31 = arith.maximumf %29, %30 : vector<8x32xf32>
    %c0_20 = arith.constant 0 : index
    %c0_21 = arith.constant 0 : index
    %32 = vector.load %arg3[%c0_20, %c0_21] : memref<32x2xf32, #tpu.memory_space<vmem>>, vector<32x2xf32>
    %cst_22 = arith.constant dense<0.000000e+00> : vector<8x2xf32>
    %33 = tpu.matmul %31, %32, %cst_22 {dimension_numbers = #tpu.dot_dimension_numbers<[1], [0], [0], [1], [0, 0, 1, 1], [], []>} : vector<8x32xf32>, vector<32x2xf32>, vector<8x2xf32> -> vector<8x2xf32>
    %34 = vector.broadcast %24 : vector<1x2xf32> to vector<8x2xf32>
    %35 = arith.addf %33, %34 : vector<8x2xf32>
    %cst_23 = arith.constant dense<0xFF800000> : vector<8xf32>
    %36 = vector.multi_reduction <maximumf>, %35, %cst_23 [1] : vector<8x2xf32> to vector<8xf32>
    %37 = vector.shape_cast %36 : vector<8xf32> to vector<8x1xf32>
    %38 = tpu.iota {dimensions = array<i32: 1>} : vector<8x2xi32>
    %39 = vector.broadcast %37 : vector<8x1xf32> to vector<8x2xf32>
    %40 = arith.cmpf oeq, %35, %39 : vector<8x2xf32>
    %c2_i32 = arith.constant 2 : i32
    %41 = vector.broadcast %c2_i32 : i32 to vector<8x2xi32>
    %42 = arith.select %40, %38, %41 : vector<8x2xi1>, vector<8x2xi32>
    %cst_24 = arith.constant dense<2147483647> : vector<8xi32>
    %43 = vector.multi_reduction <minsi>, %42, %cst_24 [1] : vector<8x2xi32> to vector<8xi32>
    %44 = vector.shape_cast %43 : vector<8xi32> to vector<8x1xi32>
    %c1_i32 = arith.constant 1 : i32
    %45 = vector.broadcast %c1_i32 : i32 to vector<8x1xi32>
    %46 = arith.cmpi eq, %44, %45 : vector<8x1xi32>
    %c11_i32 = arith.constant 11 : i32
    %47 = vector.broadcast %c11_i32 : i32 to vector<8x1xi32>
    %48 = arith.select %46, %47, %22 : vector<8x1xi1>, vector<8x1xi32>
    %49 = vector.shape_cast %48 : vector<8x1xi32> to vector<8x1xi32>
    %50 = vector.broadcast %49 : vector<8x1xi32> to vector<8x128xi32>
    %c0_25 = arith.constant 0 : index
    %c0_26 = arith.constant 0 : index
    %51 = vector.load %arg8[%c0_25, %c0_26] : memref<8x128xi32, #tpu.memory_space<vmem>>, vector<8x128xi32>
    tpu.vector_store %arg8[%c0_25, %c0_26], %50 {strides = array<i32>} : memref<8x128xi32, #tpu.memory_space<vmem>>, vector<8x128xi32>,
    return
  }
  func.func @transform_0(%arg0: i32) -> (i32, i32) {
    %c0_i32 = arith.constant 0 : i32
    %c0_i32_0 = arith.constant 0 : i32
    return %arg0, %c0_i32 : i32, i32
  }
  func.func @transform_1(%arg0: i32) -> (i32, i32) {
    %c0_i32 = arith.constant 0 : i32
    %c0_i32_0 = arith.constant 0 : i32
    %c0_i32_1 = arith.constant 0 : i32
    return %c0_i32, %c0_i32_0 : i32, i32
  }
  func.func @transform_2(%arg0: i32) -> (i32, i32) {
    %c0_i32 = arith.constant 0 : i32
    %c0_i32_0 = arith.constant 0 : i32
    %c0_i32_1 = arith.constant 0 : i32
    return %c0_i32, %c0_i32_0 : i32, i32
  }
  func.func @transform_3(%arg0: i32) -> (i32, i32) {
    %c0_i32 = arith.constant 0 : i32
    %c0_i32_0 = arith.constant 0 : i32
    return %arg0, %c0_i32 : i32, i32
  }
  func.func @transform_4(%arg0: i32) -> (i32, i32) {
    %c0_i32 = arith.constant 0 : i32
    %c0_i32_0 = arith.constant 0 : i32
    %c0_i32_1 = arith.constant 0 : i32
    return %c0_i32, %c0_i32_0 : i32, i32
  }
  func.func @transform_5(%arg0: i32) -> (i32, i32) {
    %c0_i32 = arith.constant 0 : i32
    %c0_i32_0 = arith.constant 0 : i32
    %c0_i32_1 = arith.constant 0 : i32
    return %c0_i32, %c0_i32_0 : i32, i32
  }
  func.func @transform_6(%arg0: i32) -> (i32, i32) {
    %c0_i32 = arith.constant 0 : i32
    %c0_i32_0 = arith.constant 0 : i32
    %c0_i32_1 = arith.constant 0 : i32
    return %c0_i32, %c0_i32_0 : i32, i32
  }
  func.func @transform_7(%arg0: i32) -> (i32, i32) {
    %c0_i32 = arith.constant 0 : i32
    %c0_i32_0 = arith.constant 0 : i32
    return %arg0, %c0_i32 : i32, i32
  }
}

</mosaic_0001>

<llo_original>
// kernel: tpu_custom_call.1
$region0: #{tpu_custom_call.1}
  #allocation0 [shape = 'u32[]', space=smem, size = 0x4, offset = 0x4, fixed_abs, tag = 'smem constant byte address 0x4 - core index']
  #allocation1 [shape = 'u32[144,128]{1,0:T(1,128)}', space=vmem, size = 0x12000, scoped, tag = 'internal scratch']
  %s0 = inlined_call_operand.vmem [shape: f32[8,128], index: 0, kind: input, shape index: {}]
  %s1 = inlined_call_operand.vmem [shape: f32[128,32], index: 1, kind: input, shape index: {}]
  %s2 = inlined_call_operand.vmem [shape: f32[32,2], index: 2, kind: input, shape index: {}]
  %s3 = inlined_call_operand.vmem [shape: bf16[8,3072], index: 3, kind: input, shape index: {}]
  %s4 = inlined_call_operand.vmem [shape: bf16[3072,64], index: 4, kind: input, shape index: {}]
  %s5 = inlined_call_operand.vmem [shape: bf16[64,10], index: 5, kind: input, shape index: {}]
  %s6 = inlined_call_operand.vmem [shape: f32[8,128], index: 6, kind: input, shape index: {}]
  %s7 = inlined_call_operand.hbm [shape: s32[8,128], index: 7, kind: output, shape index: {}]
  %s8 = sld [smem:[#allocation0]]
  $region38: #{tpu_custom_call.1} parent=0
    _
  %s10 = ssub.s32 1, %s8
  %s11 = scalar_select 0, %s10, %s8
  $region1: #{tpu_custom_call.1} parent=0
    #allocation2 [shape = 'u8[4096]{0}', space=vmem, size = 0x1000, scoped, tag = 'output window, operand 0, single buffered']
    #allocation3 [shape = 's32[1]{0}', space=sflag, size = 0x4, scoped, tag = 'scoped memory for tpu_custom_call.1']
    %12 = vsyncpa [#allocation3], 0
    // Predicated region
    $region2: #{tpu_custom_call.1} parent=1 // pred_check
      _
    $region3: #{tpu_custom_call.1} parent=1 // pred_check_branch
      %14 = sbr.rel (0) target = $region5
    $region4: #{tpu_custom_call.1} parent=1 // pred_region
      _
    $region5: #{tpu_custom_call.1} parent=1 // pred_fallthru
      _
    // Predicated region
    $region6: #{tpu_custom_call.1} parent=1 // pred_check
      _
    $region7: #{tpu_custom_call.1} parent=1 // pred_check_branch
      %16 = sbr.rel (0) target = $region9
    $region8: #{tpu_custom_call.1} parent=1 // pred_region
      _
    $region9: #{tpu_custom_call.1} parent=1 // pred_fallthru
      _
    // Predicated region
    $region10: #{tpu_custom_call.1} parent=1 // pred_check
      _
    $region11: #{tpu_custom_call.1} parent=1 // pred_check_branch
      %18 = sbr.rel (0) target = $region13
    $region12: #{tpu_custom_call.1} parent=1 // pred_region
      _
    $region13: #{tpu_custom_call.1} parent=1 // pred_fallthru
      _
    // Predicated region
    $region14: #{tpu_custom_call.1} parent=1 // pred_check
      _
    $region15: #{tpu_custom_call.1} parent=1 // pred_check_branch
      %20 = sbr.rel (0) target = $region17
    $region16: #{tpu_custom_call.1} parent=1 // pred_region
      _
    $region17: #{tpu_custom_call.1} parent=1 // pred_fallthru
      _
    // Predicated region
    $region18: #{tpu_custom_call.1} parent=1 // pred_check
      _
    $region19: #{tpu_custom_call.1} parent=1 // pred_check_branch
      %22 = sbr.rel (0) target = $region21
    $region20: #{tpu_custom_call.1} parent=1 // pred_region
      _
    $region21: #{tpu_custom_call.1} parent=1 // pred_fallthru
      _
    // Predicated region
    $region22: #{tpu_custom_call.1} parent=1 // pred_check
      _
    $region23: #{tpu_custom_call.1} parent=1 // pred_check_branch
      %24 = sbr.rel (0) target = $region25
    $region24: #{tpu_custom_call.1} parent=1 // pred_region
      _
    $region25: #{tpu_custom_call.1} parent=1 // pred_fallthru
      _
    // Predicated region
    $region26: #{tpu_custom_call.1} parent=1 // pred_check
      _
    $region27: #{tpu_custom_call.1} parent=1 // pred_check_branch
      %26 = sbr.rel (0) target = $region29
    $region28: #{tpu_custom_call.1} parent=1 // pred_region
      _
    $region29: #{tpu_custom_call.1} parent=1 // pred_fallthru
      _
    %v28 = vld [vmem:[%s6] sm:$0x1]
    %v29 = vld [vmem:[%s6 + $0x1] sm:$0x1]
    %v30 = vld [vmem:[%s3] sm:$0xff]
    %v31 = vld [vmem:[%s3 + $0x8] sm:$0xff]
    %v32 = vld [vmem:[%s3 + $0x10] sm:$0xff]
    %v33 = vld [vmem:[%s3 + $0x18] sm:$0xff]
    %v34 = vld [vmem:[%s3 + $0x20] sm:$0xff]
    %v35 = vld [vmem:[%s3 + $0x28] sm:$0xff]
    %v36 = vld [vmem:[%s3 + $0x30] sm:$0xff]
    %v37 = vld [vmem:[%s3 + $0x38] sm:$0xff]
    %v38 = vld [vmem:[%s3 + $0x40] sm:$0xff]
    %v39 = vld [vmem:[%s3 + $0x48] sm:$0xff]
    %v40 = vld [vmem:[%s3 + $0x50] sm:$0xff]
    %v41 = vld [vmem:[%s3 + $0x58] sm:$0xff]
    %v42 = vld [vmem:[%s4] sm:$0xf]
    %v43 = vld [vmem:[%s4 + $0x4] sm:$0xf]
    %v44 = vld [vmem:[%s4 + $0x8] sm:$0xf]
    %v45 = vld [vmem:[%s4 + $0xc] sm:$0xf]
    %v46 = vld [vmem:[%s4 + $0x10] sm:$0xf]
    %v47 = vld [vmem:[%s4 + $0x14] sm:$0xf]
    %v48 = vld [vmem:[%s4 + $0x18] sm:$0xf]
    %v49 = vld [vmem:[%s4 + $0x1c] sm:$0xf]
    %v50 = vld [vmem:[%s4 + $0x20] sm:$0xf]
    %v51 = vld [vmem:[%s4 + $0x24] sm:$0xf]
    %v52 = vld [vmem:[%s4 + $0x28] sm:$0xf]
    %v53 = vld [vmem:[%s4 + $0x2c] sm:$0xf]
    %v54 = vld [vmem:[%s4 + $0x30] sm:$0xf]
    %v55 = vld [vmem:[%s4 + $0x34] sm:$0xf]
    %v56 = vld [vmem:[%s4 + $0x38] sm:$0xf]
    %v57 = vld [vmem:[%s4 + $0x3c] sm:$0xf]
    %v58 = vld [vmem:[%s4 + $0x40] sm:$0xf]
    %v59 = vld [vmem:[%s4 + $0x44] sm:$0xf]
    %v60 = vld [vmem:[%s4 + $0x48] sm:$0xf]
    %v61 = vld [vmem:[%s4 + $0x4c] sm:$0xf]
    %v62 = vld [vmem:[%s4 + $0x50] sm:$0xf]
    %v63 = vld [vmem:[%s4 + $0x54] sm:$0xf]
    %v64 = vld [vmem:[%s4 + $0x58] sm:$0xf]
    %v65 = vld [vmem:[%s4 + $0x5c] sm:$0xf]
    %v66 = vld [vmem:[%s4 + $0x60] sm:$0xf]
    %v67 = vld [vmem:[%s4 + $0x64] sm:$0xf]
    %v68 = vld [vmem:[%s4 + $0x68] sm:$0xf]
    %v69 = vld [vmem:[%s4 + $0x6c] sm:$0xf]
    %v70 = vld [vmem:[%s4 + $0x70] sm:$0xf]
    %v71 = vld [vmem:[%s4 + $0x74] sm:$0xf]
    %v72 = vld [vmem:[%s4 + $0x78] sm:$0xf]
    %v73 = vld [vmem:[%s4 + $0x7c] sm:$0xf]
    %v74 = vld [vmem:[%s4 + $0x80] sm:$0xf]
    %v75 = vld [vmem:[%s4 + $0x84] sm:$0xf]
    %v76 = vld [vmem:[%s4 + $0x88] sm:$0xf]
    %v77 = vld [vmem:[%s4 + $0x8c] sm:$0xf]
    %v78 = vld [vmem:[%s4 + $0x90] sm:$0xf]
    %v79 = vld [vmem:[%s4 + $0x94] sm:$0xf]
    %v80 = vld [vmem:[%s4 + $0x98] sm:$0xf]
    %v81 = vld [vmem:[%s4 + $0x9c] sm:$0xf]
    %v82 = vld [vmem:[%s4 + $0xa0] sm:$0xf]
    %v83 = vld [vmem:[%s4 + $0xa4] sm:$0xf]
    %v84 = vld [vmem:[%s4 + $0xa8] sm:$0xf]
    %v85 = vld [vmem:[%s4 + $0xac] sm:$0xf]
    %v86 = vld [vmem:[%s4 + $0xb0] sm:$0xf]
    %v87 = vld [vmem:[%s4 + $0xb4] sm:$0xf]
    %v88 = vld [vmem:[%s4 + $0xb8] sm:$0xf]
    %v89 = vld [vmem:[%s4 + $0xbc] sm:$0xf]
    %v90 = vld [vmem:[%s4 + $0xc0] sm:$0xf]
    %v91 = vld [vmem:[%s4 + $0xc4] sm:$0xf]
    %v92 = vld [vmem:[%s4 + $0xc8] sm:$0xf]
    %v93 = vld [vmem:[%s4 + $0xcc] sm:$0xf]
    %v94 = vld [vmem:[%s4 + $0xd0] sm:$0xf]
    %v95 = vld [vmem:[%s4 + $0xd4] sm:$0xf]
    %v96 = vld [vmem:[%s4 + $0xd8] sm:$0xf]
    %v97 = vld [vmem:[%s4 + $0xdc] sm:$0xf]
    %v98 = vld [vmem:[%s4 + $0xe0] sm:$0xf]
    %v99 = vld [vmem:[%s4 + $0xe4] sm:$0xf]
    %v100 = vld [vmem:[%s4 + $0xe8] sm:$0xf]
    %v101 = vld [vmem:[%s4 + $0xec] sm:$0xf]
    %v102 = vld [vmem:[%s4 + $0xf0] sm:$0xf]
    %v103 = vld [vmem:[%s4 + $0xf4] sm:$0xf]
    %v104 = vld [vmem:[%s4 + $0xf8] sm:$0xf]
    %v105 = vld [vmem:[%s4 + $0xfc] sm:$0xf]
    %v106 = vld [vmem:[%s4 + $0x100] sm:$0xf]
    %v107 = vld [vmem:[%s4 + $0x104] sm:$0xf]
    %v108 = vld [vmem:[%s4 + $0x108] sm:$0xf]
    %v109 = vld [vmem:[%s4 + $0x10c] sm:$0xf]
    %v110 = vld [vmem:[%s4 + $0x110] sm:$0xf]
    %v111 = vld [vmem:[%s4 + $0x114] sm:$0xf]
    %v112 = vld [vmem:[%s4 + $0x118] sm:$0xf]
    %v113 = vld [vmem:[%s4 + $0x11c] sm:$0xf]
    %v114 = vld [vmem:[%s4 + $0x120] sm:$0xf]
    %v115 = vld [vmem:[%s4 + $0x124] sm:$0xf]
    %v116 = vld [vmem:[%s4 + $0x128] sm:$0xf]
    %v117 = vld [vmem:[%s4 + $0x12c] sm:$0xf]
    %v118 = vld [vmem:[%s4 + $0x130] sm:$0xf]
    %v119 = vld [vmem:[%s4 + $0x134] sm:$0xf]
    %v120 = vld [vmem:[%s4 + $0x138] sm:$0xf]
    %v121 = vld [vmem:[%s4 + $0x13c] sm:$0xf]
    %v122 = vld [vmem:[%s4 + $0x140] sm:$0xf]
    %v123 = vld [vmem:[%s4 + $0x144] sm:$0xf]
    %v124 = vld [vmem:[%s4 + $0x148] sm:$0xf]
    %v125 = vld [vmem:[%s4 + $0x14c] sm:$0xf]
    %v126 = vld [vmem:[%s4 + $0x150] sm:$0xf]
    %v127 = vld [vmem:[%s4 + $0x154] sm:$0xf]
    %v128 = vld [vmem:[%s4 + $0x158] sm:$0xf]
    %v129 = vld [vmem:[%s4 + $0x15c] sm:$0xf]
    %v130 = vld [vmem:[%s4 + $0x160] sm:$0xf]
    %v131 = vld [vmem:[%s4 + $0x164] sm:$0xf]
    %v132 = vld [vmem:[%s4 + $0x168] sm:$0xf]
    %v133 = vld [vmem:[%s4 + $0x16c] sm:$0xf]
    %v134 = vld [vmem:[%s4 + $0x170] sm:$0xf]
    %v135 = vld [vmem:[%s4 + $0x174] sm:$0xf]
    %v136 = vld [vmem:[%s4 + $0x178] sm:$0xf]
    %v137 = vld [vmem:[%s4 + $0x17c] sm:$0xf]
    %v138 = vld [vmem:[%s4 + $0x180] sm:$0xf]
    %v139 = vld [vmem:[%s4 + $0x184] sm:$0xf]
    %v140 = vld [vmem:[%s4 + $0x188] sm:$0xf]
    %v141 = vld [vmem:[%s4 + $0x18c] sm:$0xf]
    %v142 = vld [vmem:[%s4 + $0x190] sm:$0xf]
    %v143 = vld [vmem:[%s4 + $0x194] sm:$0xf]
    %v144 = vld [vmem:[%s4 + $0x198] sm:$0xf]
    %v145 = vld [vmem:[%s4 + $0x19c] sm:$0xf]
    %v146 = vld [vmem:[%s4 + $0x1a0] sm:$0xf]
    %v147 = vld [vmem:[%s4 + $0x1a4] sm:$0xf]
    %v148 = vld [vmem:[%s4 + $0x1a8] sm:$0xf]
    %v149 = vld [vmem:[%s4 + $0x1ac] sm:$0xf]
    %v150 = vld [vmem:[%s4 + $0x1b0] sm:$0xf]
    %v151 = vld [vmem:[%s4 + $0x1b4] sm:$0xf]
    %v152 = vld [vmem:[%s4 + $0x1b8] sm:$0xf]
    %v153 = vld [vmem:[%s4 + $0x1bc] sm:$0xf]
    %v154 = vld [vmem:[%s4 + $0x1c0] sm:$0xf]
    %v155 = vld [vmem:[%s4 + $0x1c4] sm:$0xf]
    %v156 = vld [vmem:[%s4 + $0x1c8] sm:$0xf]
    %v157 = vld [vmem:[%s4 + $0x1cc] sm:$0xf]
    %v158 = vld [vmem:[%s4 + $0x1d0] sm:$0xf]
    %v159 = vld [vmem:[%s4 + $0x1d4] sm:$0xf]
    %v160 = vld [vmem:[%s4 + $0x1d8] sm:$0xf]
    %v161 = vld [vmem:[%s4 + $0x1dc] sm:$0xf]
    %v162 = vld [vmem:[%s4 + $0x1e0] sm:$0xf]
    %v163 = vld [vmem:[%s4 + $0x1e4] sm:$0xf]
    %v164 = vld [vmem:[%s4 + $0x1e8] sm:$0xf]
    %v165 = vld [vmem:[%s4 + $0x1ec] sm:$0xf]
    %v166 = vld [vmem:[%s4 + $0x1f0] sm:$0xf]
    %v167 = vld [vmem:[%s4 + $0x1f4] sm:$0xf]
    %v168 = vld [vmem:[%s4 + $0x1f8] sm:$0xf]
    %v169 = vld [vmem:[%s4 + $0x1fc] sm:$0xf]
    %v170 = vld [vmem:[%s4 + $0x200] sm:$0xf]
    %v171 = vld [vmem:[%s4 + $0x204] sm:$0xf]
    %v172 = vld [vmem:[%s4 + $0x208] sm:$0xf]
    %v173 = vld [vmem:[%s4 + $0x20c] sm:$0xf]
    %v174 = vld [vmem:[%s4 + $0x210] sm:$0xf]
    %v175 = vld [vmem:[%s4 + $0x214] sm:$0xf]
    %v176 = vld [vmem:[%s4 + $0x218] sm:$0xf]
    %v177 = vld [vmem:[%s4 + $0x21c] sm:$0xf]
    %v178 = vld [vmem:[%s4 + $0x220] sm:$0xf]
    %v179 = vld [vmem:[%s4 + $0x224] sm:$0xf]
    %v180 = vld [vmem:[%s4 + $0x228] sm:$0xf]
    %v181 = vld [vmem:[%s4 + $0x22c] sm:$0xf]
    %v182 = vld [vmem:[%s4 + $0x230] sm:$0xf]
    %v183 = vld [vmem:[%s4 + $0x234] sm:$0xf]
    %v184 = vld [vmem:[%s4 + $0x238] sm:$0xf]
    %v185 = vld [vmem:[%s4 + $0x23c] sm:$0xf]
    %v186 = vld [vmem:[%s4 + $0x240] sm:$0xf]
    %v187 = vld [vmem:[%s4 + $0x244] sm:$0xf]
    %v188 = vld [vmem:[%s4 + $0x248] sm:$0xf]
    %v189 = vld [vmem:[%s4 + $0x24c] sm:$0xf]
    %v190 = vld [vmem:[%s4 + $0x250] sm:$0xf]
    %v191 = vld [vmem:[%s4 + $0x254] sm:$0xf]
    %v192 = vld [vmem:[%s4 + $0x258] sm:$0xf]
    %v193 = vld [vmem:[%s4 + $0x25c] sm:$0xf]
    %v194 = vld [vmem:[%s4 + $0x260] sm:$0xf]
    %v195 = vld [vmem:[%s4 + $0x264] sm:$0xf]
    %v196 = vld [vmem:[%s4 + $0x268] sm:$0xf]
    %v197 = vld [vmem:[%s4 + $0x26c] sm:$0xf]
    %v198 = vld [vmem:[%s4 + $0x270] sm:$0xf]
    %v199 = vld [vmem:[%s4 + $0x274] sm:$0xf]
    %v200 = vld [vmem:[%s4 + $0x278] sm:$0xf]
    %v201 = vld [vmem:[%s4 + $0x27c] sm:$0xf]
    %v202 = vld [vmem:[%s4 + $0x280] sm:$0xf]
    %v203 = vld [vmem:[%s4 + $0x284] sm:$0xf]
    %v204 = vld [vmem:[%s4 + $0x288] sm:$0xf]
    %v205 = vld [vmem:[%s4 + $0x28c] sm:$0xf]
    %v206 = vld [vmem:[%s4 + $0x290] sm:$0xf]
    %v207 = vld [vmem:[%s4 + $0x294] sm:$0xf]
    %v208 = vld [vmem:[%s4 + $0x298] sm:$0xf]
    %v209 = vld [vmem:[%s4 + $0x29c] sm:$0xf]
    %v210 = vld [vmem:[%s4 + $0x2a0] sm:$0xf]
    %v211 = vld [vmem:[%s4 + $0x2a4] sm:$0xf]
    %v212 = vld [vmem:[%s4 + $0x2a8] sm:$0xf]
    %v213 = vld [vmem:[%s4 + $0x2ac] sm:$0xf]
    %v214 = vld [vmem:[%s4 + $0x2b0] sm:$0xf]
    %v215 = vld [vmem:[%s4 + $0x2b4] sm:$0xf]
    %v216 = vld [vmem:[%s4 + $0x2b8] sm:$0xf]
    %v217 = vld [vmem:[%s4 + $0x2bc] sm:$0xf]
    %v218 = vld [vmem:[%s4 + $0x2c0] sm:$0xf]
    %v219 = vld [vmem:[%s4 + $0x2c4] sm:$0xf]
    %v220 = vld [vmem:[%s4 + $0x2c8] sm:$0xf]
    %v221 = vld [vmem:[%s4 + $0x2cc] sm:$0xf]
    %v222 = vld [vmem:[%s4 + $0x2d0] sm:$0xf]
    %v223 = vld [vmem:[%s4 + $0x2d4] sm:$0xf]
    %v224 = vld [vmem:[%s4 + $0x2d8] sm:$0xf]
    %v225 = vld [vmem:[%s4 + $0x2dc] sm:$0xf]
    %v226 = vld [vmem:[%s4 + $0x2e0] sm:$0xf]
    %v227 = vld [vmem:[%s4 + $0x2e4] sm:$0xf]
    %v228 = vld [vmem:[%s4 + $0x2e8] sm:$0xf]
    %v229 = vld [vmem:[%s4 + $0x2ec] sm:$0xf]
    %v230 = vld [vmem:[%s4 + $0x2f0] sm:$0xf]
    %v231 = vld [vmem:[%s4 + $0x2f4] sm:$0xf]
    %v232 = vld [vmem:[%s4 + $0x2f8] sm:$0xf]
    %v233 = vld [vmem:[%s4 + $0x2fc] sm:$0xf]
    %v234 = vld [vmem:[%s4 + $0x300] sm:$0xf]
    %v235 = vld [vmem:[%s4 + $0x304] sm:$0xf]
    %v236 = vld [vmem:[%s4 + $0x308] sm:$0xf]
    %v237 = vld [vmem:[%s4 + $0x30c] sm:$0xf]
    %v238 = vld [vmem:[%s4 + $0x310] sm:$0xf]
    %v239 = vld [vmem:[%s4 + $0x314] sm:$0xf]
    %v240 = vld [vmem:[%s4 + $0x318] sm:$0xf]
    %v241 = vld [vmem:[%s4 + $0x31c] sm:$0xf]
    %v242 = vld [vmem:[%s4 + $0x320] sm:$0xf]
    %v243 = vld [vmem:[%s4 + $0x324] sm:$0xf]
    %v244 = vld [vmem:[%s4 + $0x328] sm:$0xf]
    %v245 = vld [vmem:[%s4 + $0x32c] sm:$0xf]
    %v246 = vld [vmem:[%s4 + $0x330] sm:$0xf]
    %v247 = vld [vmem:[%s4 + $0x334] sm:$0xf]
    %v248 = vld [vmem:[%s4 + $0x338] sm:$0xf]
    %v249 = vld [vmem:[%s4 + $0x33c] sm:$0xf]
    %v250 = vld [vmem:[%s4 + $0x340] sm:$0xf]
    %v251 = vld [vmem:[%s4 + $0x344] sm:$0xf]
    %v252 = vld [vmem:[%s4 + $0x348] sm:$0xf]
    %v253 = vld [vmem:[%s4 + $0x34c] sm:$0xf]
    %v254 = vld [vmem:[%s4 + $0x350] sm:$0xf]
    %v255 = vld [vmem:[%s4 + $0x354] sm:$0xf]
    %v256 = vld [vmem:[%s4 + $0x358] sm:$0xf]
    %v257 = vld [vmem:[%s4 + $0x35c] sm:$0xf]
    %v258 = vld [vmem:[%s4 + $0x360] sm:$0xf]
    %v259 = vld [vmem:[%s4 + $0x364] sm:$0xf]
    %v260 = vld [vmem:[%s4 + $0x368] sm:$0xf]
    %v261 = vld [vmem:[%s4 + $0x36c] sm:$0xf]
    %v262 = vld [vmem:[%s4 + $0x370] sm:$0xf]
    %v263 = vld [vmem:[%s4 + $0x374] sm:$0xf]
    %v264 = vld [vmem:[%s4 + $0x378] sm:$0xf]
    %v265 = vld [vmem:[%s4 + $0x37c] sm:$0xf]
    %v266 = vld [vmem:[%s4 + $0x380] sm:$0xf]
    %v267 = vld [vmem:[%s4 + $0x384] sm:$0xf]
    %v268 = vld [vmem:[%s4 + $0x388] sm:$0xf]
    %v269 = vld [vmem:[%s4 + $0x38c] sm:$0xf]
    %v270 = vld [vmem:[%s4 + $0x390] sm:$0xf]
    %v271 = vld [vmem:[%s4 + $0x394] sm:$0xf]
    %v272 = vld [vmem:[%s4 + $0x398] sm:$0xf]
    %v273 = vld [vmem:[%s4 + $0x39c] sm:$0xf]
    %v274 = vld [vmem:[%s4 + $0x3a0] sm:$0xf]
    %v275 = vld [vmem:[%s4 + $0x3a4] sm:$0xf]
    %v276 = vld [vmem:[%s4 + $0x3a8] sm:$0xf]
    %v277 = vld [vmem:[%s4 + $0x3ac] sm:$0xf]
    %v278 = vld [vmem:[%s4 + $0x3b0] sm:$0xf]
    %v279 = vld [vmem:[%s4 + $0x3b4] sm:$0xf]
    %v280 = vld [vmem:[%s4 + $0x3b8] sm:$0xf]
    %v281 = vld [vmem:[%s4 + $0x3bc] sm:$0xf]
    %v282 = vld [vmem:[%s4 + $0x3c0] sm:$0xf]
    %v283 = vld [vmem:[%s4 + $0x3c4] sm:$0xf]
    %v284 = vld [vmem:[%s4 + $0x3c8] sm:$0xf]
    %v285 = vld [vmem:[%s4 + $0x3cc] sm:$0xf]
    %v286 = vld [vmem:[%s4 + $0x3d0] sm:$0xf]
    %v287 = vld [vmem:[%s4 + $0x3d4] sm:$0xf]
    %v288 = vld [vmem:[%s4 + $0x3d8] sm:$0xf]
    %v289 = vld [vmem:[%s4 + $0x3dc] sm:$0xf]
    %v290 = vld [vmem:[%s4 + $0x3e0] sm:$0xf]
    %v291 = vld [vmem:[%s4 + $0x3e4] sm:$0xf]
    %v292 = vld [vmem:[%s4 + $0x3e8] sm:$0xf]
    %v293 = vld [vmem:[%s4 + $0x3ec] sm:$0xf]
    %v294 = vld [vmem:[%s4 + $0x3f0] sm:$0xf]
    %v295 = vld [vmem:[%s4 + $0x3f4] sm:$0xf]
    %v296 = vld [vmem:[%s4 + $0x3f8] sm:$0xf]
    %v297 = vld [vmem:[%s4 + $0x3fc] sm:$0xf]
    %v298 = vld [vmem:[%s4 + $0x400] sm:$0xf]
    %v299 = vld [vmem:[%s4 + $0x404] sm:$0xf]
    %v300 = vld [vmem:[%s4 + $0x408] sm:$0xf]
    %v301 = vld [vmem:[%s4 + $0x40c] sm:$0xf]
    %v302 = vld [vmem:[%s4 + $0x410] sm:$0xf]
    %v303 = vld [vmem:[%s4 + $0x414] sm:$0xf]
    %v304 = vld [vmem:[%s4 + $0x418] sm:$0xf]
    %v305 = vld [vmem:[%s4 + $0x41c] sm:$0xf]
    %v306 = vld [vmem:[%s4 + $0x420] sm:$0xf]
    %v307 = vld [vmem:[%s4 + $0x424] sm:$0xf]
    %v308 = vld [vmem:[%s4 + $0x428] sm:$0xf]
    %v309 = vld [vmem:[%s4 + $0x42c] sm:$0xf]
    %v310 = vld [vmem:[%s4 + $0x430] sm:$0xf]
    %v311 = vld [vmem:[%s4 + $0x434] sm:$0xf]
    %v312 = vld [vmem:[%s4 + $0x438] sm:$0xf]
    %v313 = vld [vmem:[%s4 + $0x43c] sm:$0xf]
    %v314 = vld [vmem:[%s4 + $0x440] sm:$0xf]
    %v315 = vld [vmem:[%s4 + $0x444] sm:$0xf]
    %v316 = vld [vmem:[%s4 + $0x448] sm:$0xf]
    %v317 = vld [vmem:[%s4 + $0x44c] sm:$0xf]
    %v318 = vld [vmem:[%s4 + $0x450] sm:$0xf]
    %v319 = vld [vmem:[%s4 + $0x454] sm:$0xf]
    %v320 = vld [vmem:[%s4 + $0x458] sm:$0xf]
    %v321 = vld [vmem:[%s4 + $0x45c] sm:$0xf]
    %v322 = vld [vmem:[%s4 + $0x460] sm:$0xf]
    %v323 = vld [vmem:[%s4 + $0x464] sm:$0xf]
    %v324 = vld [vmem:[%s4 + $0x468] sm:$0xf]
    %v325 = vld [vmem:[%s4 + $0x46c] sm:$0xf]
    %v326 = vld [vmem:[%s4 + $0x470] sm:$0xf]
    %v327 = vld [vmem:[%s4 + $0x474] sm:$0xf]
    %v328 = vld [vmem:[%s4 + $0x478] sm:$0xf]
    %v329 = vld [vmem:[%s4 + $0x47c] sm:$0xf]
    %v330 = vld [vmem:[%s4 + $0x480] sm:$0xf]
    %v331 = vld [vmem:[%s4 + $0x484] sm:$0xf]
    %v332 = vld [vmem:[%s4 + $0x488] sm:$0xf]
    %v333 = vld [vmem:[%s4 + $0x48c] sm:$0xf]
    %v334 = vld [vmem:[%s4 + $0x490] sm:$0xf]
    %v335 = vld [vmem:[%s4 + $0x494] sm:$0xf]
    %v336 = vld [vmem:[%s4 + $0x498] sm:$0xf]
    %v337 = vld [vmem:[%s4 + $0x49c] sm:$0xf]
    %v338 = vld [vmem:[%s4 + $0x4a0] sm:$0xf]
    %v339 = vld [vmem:[%s4 + $0x4a4] sm:$0xf]
    %v340 = vld [vmem:[%s4 + $0x4a8] sm:$0xf]
    %v341 = vld [vmem:[%s4 + $0x4ac] sm:$0xf]
    %v342 = vld [vmem:[%s4 + $0x4b0] sm:$0xf]
    %v343 = vld [vmem:[%s4 + $0x4b4] sm:$0xf]
    %v344 = vld [vmem:[%s4 + $0x4b8] sm:$0xf]
    %v345 = vld [vmem:[%s4 + $0x4bc] sm:$0xf]
    %v346 = vld [vmem:[%s4 + $0x4c0] sm:$0xf]
    %v347 = vld [vmem:[%s4 + $0x4c4] sm:$0xf]
    %v348 = vld [vmem:[%s4 + $0x4c8] sm:$0xf]
    %v349 = vld [vmem:[%s4 + $0x4cc] sm:$0xf]
    %v350 = vld [vmem:[%s4 + $0x4d0] sm:$0xf]
    %v351 = vld [vmem:[%s4 + $0x4d4] sm:$0xf]
    %v352 = vld [vmem:[%s4 + $0x4d8] sm:$0xf]
    %v353 = vld [vmem:[%s4 + $0x4dc] sm:$0xf]
    %v354 = vld [vmem:[%s4 + $0x4e0] sm:$0xf]
    %v355 = vld [vmem:[%s4 + $0x4e4] sm:$0xf]
    %v356 = vld [vmem:[%s4 + $0x4e8] sm:$0xf]
    %v357 = vld [vmem:[%s4 + $0x4ec] sm:$0xf]
    %v358 = vld [vmem:[%s4 + $0x4f0] sm:$0xf]
    %v359 = vld [vmem:[%s4 + $0x4f4] sm:$0xf]
    %v360 = vld [vmem:[%s4 + $0x4f8] sm:$0xf]
    %v361 = vld [vmem:[%s4 + $0x4fc] sm:$0xf]
    %v362 = vld [vmem:[%s4 + $0x500] sm:$0xf]
    %v363 = vld [vmem:[%s4 + $0x504] sm:$0xf]
    %v364 = vld [vmem:[%s4 + $0x508] sm:$0xf]
    %v365 = vld [vmem:[%s4 + $0x50c] sm:$0xf]
    %v366 = vld [vmem:[%s4 + $0x510] sm:$0xf]
    %v367 = vld [vmem:[%s4 + $0x514] sm:$0xf]
    %v368 = vld [vmem:[%s4 + $0x518] sm:$0xf]
    %v369 = vld [vmem:[%s4 + $0x51c] sm:$0xf]
    %v370 = vld [vmem:[%s4 + $0x520] sm:$0xf]
    %v371 = vld [vmem:[%s4 + $0x524] sm:$0xf]
    %v372 = vld [vmem:[%s4 + $0x528] sm:$0xf]
    %v373 = vld [vmem:[%s4 + $0x52c] sm:$0xf]
    %v374 = vld [vmem:[%s4 + $0x530] sm:$0xf]
    %v375 = vld [vmem:[%s4 + $0x534] sm:$0xf]
    %v376 = vld [vmem:[%s4 + $0x538] sm:$0xf]
    %v377 = vld [vmem:[%s4 + $0x53c] sm:$0xf]
    %v378 = vld [vmem:[%s4 + $0x540] sm:$0xf]
    %v379 = vld [vmem:[%s4 + $0x544] sm:$0xf]
    %v380 = vld [vmem:[%s4 + $0x548] sm:$0xf]
    %v381 = vld [vmem:[%s4 + $0x54c] sm:$0xf]
    %v382 = vld [vmem:[%s4 + $0x550] sm:$0xf]
    %v383 = vld [vmem:[%s4 + $0x554] sm:$0xf]
    %v384 = vld [vmem:[%s4 + $0x558] sm:$0xf]
    %v385 = vld [vmem:[%s4 + $0x55c] sm:$0xf]
    %v386 = vld [vmem:[%s4 + $0x560] sm:$0xf]
    %v387 = vld [vmem:[%s4 + $0x564] sm:$0xf]
    %v388 = vld [vmem:[%s4 + $0x568] sm:$0xf]
    %v389 = vld [vmem:[%s4 + $0x56c] sm:$0xf]
    %v390 = vld [vmem:[%s4 + $0x570] sm:$0xf]
    %v391 = vld [vmem:[%s4 + $0x574] sm:$0xf]
    %v392 = vld [vmem:[%s4 + $0x578] sm:$0xf]
    %v393 = vld [vmem:[%s4 + $0x57c] sm:$0xf]
    %v394 = vld [vmem:[%s4 + $0x580] sm:$0xf]
    %v395 = vld [vmem:[%s4 + $0x584] sm:$0xf]
    %v396 = vld [vmem:[%s4 + $0x588] sm:$0xf]
    %v397 = vld [vmem:[%s4 + $0x58c] sm:$0xf]
    %v398 = vld [vmem:[%s4 + $0x590] sm:$0xf]
    %v399 = vld [vmem:[%s4 + $0x594] sm:$0xf]
    %v400 = vld [vmem:[%s4 + $0x598] sm:$0xf]
    %v401 = vld [vmem:[%s4 + $0x59c] sm:$0xf]
    %v402 = vld [vmem:[%s4 + $0x5a0] sm:$0xf]
    %v403 = vld [vmem:[%s4 + $0x5a4] sm:$0xf]
    %v404 = vld [vmem:[%s4 + $0x5a8] sm:$0xf]
    %v405 = vld [vmem:[%s4 + $0x5ac] sm:$0xf]
    %v406 = vld [vmem:[%s4 + $0x5b0] sm:$0xf]
    %v407 = vld [vmem:[%s4 + $0x5b4] sm:$0xf]
    %v408 = vld [vmem:[%s4 + $0x5b8] sm:$0xf]
    %v409 = vld [vmem:[%s4 + $0x5bc] sm:$0xf]
    %v410 = vld [vmem:[%s4 + $0x5c0] sm:$0xf]
    %v411 = vld [vmem:[%s4 + $0x5c4] sm:$0xf]
    %v412 = vld [vmem:[%s4 + $0x5c8] sm:$0xf]
    %v413 = vld [vmem:[%s4 + $0x5cc] sm:$0xf]
    %v414 = vld [vmem:[%s4 + $0x5d0] sm:$0xf]
    %v415 = vld [vmem:[%s4 + $0x5d4] sm:$0xf]
    %v416 = vld [vmem:[%s4 + $0x5d8] sm:$0xf]
    %v417 = vld [vmem:[%s4 + $0x5dc] sm:$0xf]
    %v418 = vld [vmem:[%s4 + $0x5e0] sm:$0xf]
    %v419 = vld [vmem:[%s4 + $0x5e4] sm:$0xf]
    %v420 = vld [vmem:[%s4 + $0x5e8] sm:$0xf]
    %v421 = vld [vmem:[%s4 + $0x5ec] sm:$0xf]
    %v422 = vld [vmem:[%s4 + $0x5f0] sm:$0xf]
    %v423 = vld [vmem:[%s4 + $0x5f4] sm:$0xf]
    %v424 = vld [vmem:[%s4 + $0x5f8] sm:$0xf]
    %v425 = vld [vmem:[%s4 + $0x5fc] sm:$0xf]
    %v426 = vlaneseq
    %v427 = vshrl.u32 %v426, 7
    %v428 = vsub.s32 0, %v427
    %v429 = vrot.slane %v28, %v428
    %v442 = vunpack.c.l.b16 %v30
    %v443 = vunpack.c.h.b16 %v30
    %v444 = vunpack.c.l.b16 %v31
    %v445 = vunpack.c.h.b16 %v31
    %v446 = vunpack.c.l.b16 %v32
    %v447 = vunpack.c.h.b16 %v32
    %v448 = vunpack.c.l.b16 %v33
    %v449 = vunpack.c.h.b16 %v33
    %v450 = vunpack.c.l.b16 %v34
    %v451 = vunpack.c.h.b16 %v34
    %v452 = vunpack.c.l.b16 %v35
    %v453 = vunpack.c.h.b16 %v35
    %v454 = vunpack.c.l.b16 %v36
    %v455 = vunpack.c.h.b16 %v36
    %v456 = vunpack.c.l.b16 %v37
    %v457 = vunpack.c.h.b16 %v37
    %v458 = vunpack.c.l.b16 %v38
    %v459 = vunpack.c.h.b16 %v38
    %v460 = vunpack.c.l.b16 %v39
    %v461 = vunpack.c.h.b16 %v39
    %v462 = vunpack.c.l.b16 %v40
    %v463 = vunpack.c.h.b16 %v40
    %v464 = vunpack.c.l.b16 %v41
    %v465 = vunpack.c.h.b16 %v41
    %v466 = vpack.c.b16 %v442, %v442
    %v467 = vpack.c.b16 %v443, %v443
    %v468 = vpack.c.b16 %v444, %v444
    %v469 = vpack.c.b16 %v445, %v445
    %v470 = vpack.c.b16 %v446, %v446
    %v471 = vpack.c.b16 %v447, %v447
    %v472 = vpack.c.b16 %v448, %v448
    %v473 = vpack.c.b16 %v449, %v449
    %v474 = vpack.c.b16 %v450, %v450
    %v475 = vpack.c.b16 %v451, %v451
    %v476 = vpack.c.b16 %v452, %v452
    %v477 = vpack.c.b16 %v453, %v453
    %v478 = vpack.c.b16 %v454, %v454
    %v479 = vpack.c.b16 %v455, %v455
    %v480 = vpack.c.b16 %v456, %v456
    %v481 = vpack.c.b16 %v457, %v457
    %v482 = vpack.c.b16 %v458, %v458
    %v483 = vpack.c.b16 %v459, %v459
    %v484 = vpack.c.b16 %v460, %v460
    %v485 = vpack.c.b16 %v461, %v461
    %v486 = vpack.c.b16 %v462, %v462
    %v487 = vpack.c.b16 %v463, %v463
    %v488 = vpack.c.b16 %v464, %v464
    %v489 = vpack.c.b16 %v465, %v465
    %v898 = vunpack.c.l.b16 %v42
    %v899 = vunpack.c.l.b16 %v43
    %v900 = vunpack.c.l.b16 %v44
    %v901 = vunpack.c.l.b16 %v45
    %v902 = vunpack.c.l.b16 %v46
    %v903 = vunpack.c.l.b16 %v47
    %v904 = vunpack.c.l.b16 %v48
    %v905 = vunpack.c.l.b16 %v49
    %v906 = vunpack.c.l.b16 %v50
    %v907 = vunpack.c.l.b16 %v51
    %v908 = vunpack.c.l.b16 %v52
    %v909 = vunpack.c.l.b16 %v53
    %v910 = vunpack.c.l.b16 %v54
    %v911 = vunpack.c.l.b16 %v55
    %v912 = vunpack.c.l.b16 %v56
    %v913 = vunpack.c.l.b16 %v57
    %v914 = vunpack.c.l.b16 %v58
    %v915 = vunpack.c.l.b16 %v59
    %v916 = vunpack.c.l.b16 %v60
    %v917 = vunpack.c.l.b16 %v61
    %v918 = vunpack.c.l.b16 %v62
    %v919 = vunpack.c.l.b16 %v63
    %v920 = vunpack.c.l.b16 %v64
    %v921 = vunpack.c.l.b16 %v65
    %v922 = vunpack.c.l.b16 %v66
    %v923 = vunpack.c.l.b16 %v67
    %v924 = vunpack.c.l.b16 %v68
    %v925 = vunpack.c.l.b16 %v69
    %v926 = vunpack.c.l.b16 %v70
    %v927 = vunpack.c.l.b16 %v71
    %v928 = vunpack.c.l.b16 %v72
    %v929 = vunpack.c.l.b16 %v73
    %v930 = vunpack.c.l.b16 %v74
    %v931 = vunpack.c.l.b16 %v75
    %v932 = vunpack.c.l.b16 %v76
    %v933 = vunpack.c.l.b16 %v77
    %v934 = vunpack.c.l.b16 %v78
    %v935 = vunpack.c.l.b16 %v79
    %v936 = vunpack.c.l.b16 %v80
    %v937 = vunpack.c.l.b16 %v81
    %v938 = vunpack.c.l.b16 %v82
    %v939 = vunpack.c.l.b16 %v83
    %v940 = vunpack.c.l.b16 %v84
    %v941 = vunpack.c.l.b16 %v85
    %v942 = vunpack.c.l.b16 %v86
    %v943 = vunpack.c.l.b16 %v87
    %v944 = vunpack.c.l.b16 %v88
    %v945 = vunpack.c.l.b16 %v89
    %v946 = vunpack.c.l.b16 %v90
    %v947 = vunpack.c.l.b16 %v91
    %v948 = vunpack.c.l.b16 %v92
    %v949 = vunpack.c.l.b16 %v93
    %v950 = vunpack.c.l.b16 %v94
    %v951 = vunpack.c.l.b16 %v95
    %v952 = vunpack.c.l.b16 %v96
    %v953 = vunpack.c.l.b16 %v97
    %v954 = vunpack.c.l.b16 %v98
    %v955 = vunpack.c.l.b16 %v99
    %v956 = vunpack.c.l.b16 %v100
    %v957 = vunpack.c.l.b16 %v101
    %v958 = vunpack.c.l.b16 %v102
    %v959 = vunpack.c.l.b16 %v103
    %v960 = vunpack.c.l.b16 %v104
    %v961 = vunpack.c.l.b16 %v105
    %v962 = vunpack.c.l.b16 %v106
    %v963 = vunpack.c.l.b16 %v107
    %v964 = vunpack.c.l.b16 %v108
    %v965 = vunpack.c.l.b16 %v109
    %v966 = vunpack.c.l.b16 %v110
    %v967 = vunpack.c.l.b16 %v111
    %v968 = vunpack.c.l.b16 %v112
    %v969 = vunpack.c.l.b16 %v113
    %v970 = vunpack.c.l.b16 %v114
    %v971 = vunpack.c.l.b16 %v115
    %v972 = vunpack.c.l.b16 %v116
    %v973 = vunpack.c.l.b16 %v117
    %v974 = vunpack.c.l.b16 %v118
    %v975 = vunpack.c.l.b16 %v119
    %v976 = vunpack.c.l.b16 %v120
    %v977 = vunpack.c.l.b16 %v121
    %v978 = vunpack.c.l.b16 %v122
    %v979 = vunpack.c.l.b16 %v123
    %v980 = vunpack.c.l.b16 %v124
    %v981 = vunpack.c.l.b16 %v125
    %v982 = vunpack.c.l.b16 %v126
    %v983 = vunpack.c.l.b16 %v127
    %v984 = vunpack.c.l.b16 %v128
    %v985 = vunpack.c.l.b16 %v129
    %v986 = vunpack.c.l.b16 %v130
    %v987 = vunpack.c.l.b16 %v131
    %v988 = vunpack.c.l.b16 %v132
    %v989 = vunpack.c.l.b16 %v133
    %v990 = vunpack.c.l.b16 %v134
    %v991 = vunpack.c.l.b16 %v135
    %v992 = vunpack.c.l.b16 %v136
    %v993 = vunpack.c.l.b16 %v137
    %v994 = vunpack.c.l.b16 %v138
    %v995 = vunpack.c.l.b16 %v139
    %v996 = vunpack.c.l.b16 %v140
    %v997 = vunpack.c.l.b16 %v141
    %v998 = vunpack.c.l.b16 %v142
    %v999 = vunpack.c.l.b16 %v143
    %v1000 = vunpack.c.l.b16 %v144
    %v1001 = vunpack.c.l.b16 %v145
    %v1002 = vunpack.c.l.b16 %v146
    %v1003 = vunpack.c.l.b16 %v147
    %v1004 = vunpack.c.l.b16 %v148
    %v1005 = vunpack.c.l.b16 %v149
    %v1006 = vunpack.c.l.b16 %v150
    %v1007 = vunpack.c.l.b16 %v151
    %v1008 = vunpack.c.l.b16 %v152
    %v1009 = vunpack.c.l.b16 %v153
    %v1010 = vunpack.c.l.b16 %v154
    %v1011 = vunpack.c.l.b16 %v155
    %v1012 = vunpack.c.l.b16 %v156
    %v1013 = vunpack.c.l.b16 %v157
    %v1014 = vunpack.c.l.b16 %v158
    %v1015 = vunpack.c.l.b16 %v159
    %v1016 = vunpack.c.l.b16 %v160
    %v1017 = vunpack.c.l.b16 %v161
    %v1018 = vunpack.c.l.b16 %v162
    %v1019 = vunpack.c.l.b16 %v163
    %v1020 = vunpack.c.l.b16 %v164
    %v1021 = vunpack.c.l.b16 %v165
    %v1022 = vunpack.c.l.b16 %v166
    %v1023 = vunpack.c.l.b16 %v167
    %v1024 = vunpack.c.l.b16 %v168
    %v1025 = vunpack.c.l.b16 %v169
    %v1026 = vunpack.c.l.b16 %v170
    %v1027 = vunpack.c.l.b16 %v171
    %v1028 = vunpack.c.l.b16 %v172
    %v1029 = vunpack.c.l.b16 %v173
    %v1030 = vunpack.c.l.b16 %v174
    %v1031 = vunpack.c.l.b16 %v175
    %v1032 = vunpack.c.l.b16 %v176
    %v1033 = vunpack.c.l.b16 %v177
    %v1034 = vunpack.c.l.b16 %v178
    %v1035 = vunpack.c.l.b16 %v179
    %v1036 = vunpack.c.l.b16 %v180
    %v1037 = vunpack.c.l.b16 %v181
    %v1038 = vunpack.c.l.b16 %v182
    %v1039 = vunpack.c.l.b16 %v183
    %v1040 = vunpack.c.l.b16 %v184
    %v1041 = vunpack.c.l.b16 %v185
    %v1042 = vunpack.c.l.b16 %v186
    %v1043 = vunpack.c.l.b16 %v187
    %v1044 = vunpack.c.l.b16 %v188
    %v1045 = vunpack.c.l.b16 %v189
    %v1046 = vunpack.c.l.b16 %v190
    %v1047 = vunpack.c.l.b16 %v191
    %v1048 = vunpack.c.l.b16 %v192
    %v1049 = vunpack.c.l.b16 %v193
    %v1050 = vunpack.c.l.b16 %v194
    %v1051 = vunpack.c.l.b16 %v195
    %v1052 = vunpack.c.l.b16 %v196
    %v1053 = vunpack.c.l.b16 %v197
    %v1054 = vunpack.c.l.b16 %v198
    %v1055 = vunpack.c.l.b16 %v199
    %v1056 = vunpack.c.l.b16 %v200
    %v1057 = vunpack.c.l.b16 %v201
    %v1058 = vunpack.c.l.b16 %v202
    %v1059 = vunpack.c.l.b16 %v203
    %v1060 = vunpack.c.l.b16 %v204
    %v1061 = vunpack.c.l.b16 %v205
    %v1062 = vunpack.c.l.b16 %v206
    %v1063 = vunpack.c.l.b16 %v207
    %v1064 = vunpack.c.l.b16 %v208
    %v1065 = vunpack.c.l.b16 %v209
    %v1066 = vunpack.c.l.b16 %v210
    %v1067 = vunpack.c.l.b16 %v211
    %v1068 = vunpack.c.l.b16 %v212
    %v1069 = vunpack.c.l.b16 %v213
    %v1070 = vunpack.c.l.b16 %v214
    %v1071 = vunpack.c.l.b16 %v215
    %v1072 = vunpack.c.l.b16 %v216
    %v1073 = vunpack.c.l.b16 %v217
    %v1074 = vunpack.c.l.b16 %v218
    %v1075 = vunpack.c.l.b16 %v219
    %v1076 = vunpack.c.l.b16 %v220
    %v1077 = vunpack.c.l.b16 %v221
    %v1078 = vunpack.c.l.b16 %v222
    %v1079 = vunpack.c.l.b16 %v223
    %v1080 = vunpack.c.l.b16 %v224
    %v1081 = vunpack.c.l.b16 %v225
    %v1082 = vunpack.c.l.b16 %v226
    %v1083 = vunpack.c.l.b16 %v227
    %v1084 = vunpack.c.l.b16 %v228
    %v1085 = vunpack.c.l.b16 %v229
    %v1086 = vunpack.c.l.b16 %v230
    %v1087 = vunpack.c.l.b16 %v231
    %v1088 = vunpack.c.l.b16 %v232
    %v1089 = vunpack.c.l.b16 %v233
    %v1090 = vunpack.c.l.b16 %v234
    %v1091 = vunpack.c.l.b16 %v235
    %v1092 = vunpack.c.l.b16 %v236
    %v1093 = vunpack.c.l.b16 %v237
    %v1094 = vunpack.c.l.b16 %v238
    %v1095 = vunpack.c.l.b16 %v239
    %v1096 = vunpack.c.l.b16 %v240
    %v1097 = vunpack.c.l.b16 %v241
    %v1098 = vunpack.c.l.b16 %v242
    %v1099 = vunpack.c.l.b16 %v243
    %v1100 = vunpack.c.l.b16 %v244
    %v1101 = vunpack.c.l.b16 %v245
    %v1102 = vunpack.c.l.b16 %v246
    %v1103 = vunpack.c.l.b16 %v247
    %v1104 = vunpack.c.l.b16 %v248
    %v1105 = vunpack.c.l.b16 %v249
    %v1106 = vunpack.c.l.b16 %v250
    %v1107 = vunpack.c.l.b16 %v251
    %v1108 = vunpack.c.l.b16 %v252
    %v1109 = vunpack.c.l.b16 %v253
    %v1110 = vunpack.c.l.b16 %v254
    %v1111 = vunpack.c.l.b16 %v255
    %v1112 = vunpack.c.l.b16 %v256
    %v1113 = vunpack.c.l.b16 %v257
    %v1114 = vunpack.c.l.b16 %v258
    %v1115 = vunpack.c.l.b16 %v259
    %v1116 = vunpack.c.l.b16 %v260
    %v1117 = vunpack.c.l.b16 %v261
    %v1118 = vunpack.c.l.b16 %v262
    %v1119 = vunpack.c.l.b16 %v263
    %v1120 = vunpack.c.l.b16 %v264
    %v1121 = vunpack.c.l.b16 %v265
    %v1122 = vunpack.c.l.b16 %v266
    %v1123 = vunpack.c.l.b16 %v267
    %v1124 = vunpack.c.l.b16 %v268
    %v1125 = vunpack.c.l.b16 %v269
    %v1126 = vunpack.c.l.b16 %v270
    %v1127 = vunpack.c.l.b16 %v271
    %v1128 = vunpack.c.l.b16 %v272
    %v1129 = vunpack.c.l.b16 %v273
    %v1130 = vunpack.c.l.b16 %v274
    %v1131 = vunpack.c.l.b16 %v275
    %v1132 = vunpack.c.l.b16 %v276
    %v1133 = vunpack.c.l.b16 %v277
    %v1134 = vunpack.c.l.b16 %v278
    %v1135 = vunpack.c.l.b16 %v279
    %v1136 = vunpack.c.l.b16 %v280
    %v1137 = vunpack.c.l.b16 %v281
    %v1138 = vunpack.c.l.b16 %v282
    %v1139 = vunpack.c.l.b16 %v283
    %v1140 = vunpack.c.l.b16 %v284
    %v1141 = vunpack.c.l.b16 %v285
    %v1142 = vunpack.c.l.b16 %v286
    %v1143 = vunpack.c.l.b16 %v287
    %v1144 = vunpack.c.l.b16 %v288
    %v1145 = vunpack.c.l.b16 %v289
    %v1146 = vunpack.c.l.b16 %v290
    %v1147 = vunpack.c.l.b16 %v291
    %v1148 = vunpack.c.l.b16 %v292
    %v1149 = vunpack.c.l.b16 %v293
    %v1150 = vunpack.c.l.b16 %v294
    %v1151 = vunpack.c.l.b16 %v295
    %v1152 = vunpack.c.l.b16 %v296
    %v1153 = vunpack.c.l.b16 %v297
    %v1154 = vunpack.c.l.b16 %v298
    %v1155 = vunpack.c.l.b16 %v299
    %v1156 = vunpack.c.l.b16 %v300
    %v1157 = vunpack.c.l.b16 %v301
    %v1158 = vunpack.c.l.b16 %v302
    %v1159 = vunpack.c.l.b16 %v303
    %v1160 = vunpack.c.l.b16 %v304
    %v1161 = vunpack.c.l.b16 %v305
    %v1162 = vunpack.c.l.b16 %v306
    %v1163 = vunpack.c.l.b16 %v307
    %v1164 = vunpack.c.l.b16 %v308
    %v1165 = vunpack.c.l.b16 %v309
    %v1166 = vunpack.c.l.b16 %v310
    %v1167 = vunpack.c.l.b16 %v311
    %v1168 = vunpack.c.l.b16 %v312
    %v1169 = vunpack.c.l.b16 %v313
    %v1170 = vunpack.c.l.b16 %v314
    %v1171 = vunpack.c.l.b16 %v315
    %v1172 = vunpack.c.l.b16 %v316
    %v1173 = vunpack.c.l.b16 %v317
    %v1174 = vunpack.c.l.b16 %v318
    %v1175 = vunpack.c.l.b16 %v319
    %v1176 = vunpack.c.l.b16 %v320
    %v1177 = vunpack.c.l.b16 %v321
    %v1178 = vunpack.c.l.b16 %v322
    %v1179 = vunpack.c.l.b16 %v323
    %v1180 = vunpack.c.l.b16 %v324
    %v1181 = vunpack.c.l.b16 %v325
    %v1182 = vunpack.c.l.b16 %v326
    %v1183 = vunpack.c.l.b16 %v327
    %v1184 = vunpack.c.l.b16 %v328
    %v1185 = vunpack.c.l.b16 %v329
    %v1186 = vunpack.c.l.b16 %v330
    %v1187 = vunpack.c.l.b16 %v331
    %v1188 = vunpack.c.l.b16 %v332
    %v1189 = vunpack.c.l.b16 %v333
    %v1190 = vunpack.c.l.b16 %v334
    %v1191 = vunpack.c.l.b16 %v335
    %v1192 = vunpack.c.l.b16 %v336
    %v1193 = vunpack.c.l.b16 %v337
    %v1194 = vunpack.c.l.b16 %v338
    %v1195 = vunpack.c.l.b16 %v339
    %v1196 = vunpack.c.l.b16 %v340
    %v1197 = vunpack.c.l.b16 %v341
    %v1198 = vunpack.c.l.b16 %v342
    %v1199 = vunpack.c.l.b16 %v343
    %v1200 = vunpack.c.l.b16 %v344
    %v1201 = vunpack.c.l.b16 %v345
    %v1202 = vunpack.c.l.b16 %v346
    %v1203 = vunpack.c.l.b16 %v347
    %v1204 = vunpack.c.l.b16 %v348
    %v1205 = vunpack.c.l.b16 %v349
    %v1206 = vunpack.c.l.b16 %v350
    %v1207 = vunpack.c.l.b16 %v351
    %v1208 = vunpack.c.l.b16 %v352
    %v1209 = vunpack.c.l.b16 %v353
    %v1210 = vunpack.c.l.b16 %v354
    %v1211 = vunpack.c.l.b16 %v355
    %v1212 = vunpack.c.l.b16 %v356
    %v1213 = vunpack.c.l.b16 %v357
    %v1214 = vunpack.c.l.b16 %v358
    %v1215 = vunpack.c.l.b16 %v359
    %v1216 = vunpack.c.l.b16 %v360
    %v1217 = vunpack.c.l.b16 %v361
    %v1218 = vunpack.c.l.b16 %v362
    %v1219 = vunpack.c.l.b16 %v363
    %v1220 = vunpack.c.l.b16 %v364
    %v1221 = vunpack.c.l.b16 %v365
    %v1222 = vunpack.c.l.b16 %v366
    %v1223 = vunpack.c.l.b16 %v367
    %v1224 = vunpack.c.l.b16 %v368
    %v1225 = vunpack.c.l.b16 %v369
    %v1226 = vunpack.c.l.b16 %v370
    %v1227 = vunpack.c.l.b16 %v371
    %v1228 = vunpack.c.l.b16 %v372
    %v1229 = vunpack.c.l.b16 %v373
    %v1230 = vunpack.c.l.b16 %v374
    %v1231 = vunpack.c.l.b16 %v375
    %v1232 = vunpack.c.l.b16 %v376
    %v1233 = vunpack.c.l.b16 %v377
    %v1234 = vunpack.c.l.b16 %v378
    %v1235 = vunpack.c.l.b16 %v379
    %v1236 = vunpack.c.l.b16 %v380
    %v1237 = vunpack.c.l.b16 %v381
    %v1238 = vunpack.c.l.b16 %v382
    %v1239 = vunpack.c.l.b16 %v383
    %v1240 = vunpack.c.l.b16 %v384
    %v1241 = vunpack.c.l.b16 %v385
    %v1242 = vunpack.c.l.b16 %v386
    %v1243 = vunpack.c.l.b16 %v387
    %v1244 = vunpack.c.l.b16 %v388
    %v1245 = vunpack.c.l.b16 %v389
    %v1246 = vunpack.c.l.b16 %v390
    %v1247 = vunpack.c.l.b16 %v391
    %v1248 = vunpack.c.l.b16 %v392
    %v1249 = vunpack.c.l.b16 %v393
    %v1250 = vunpack.c.l.b16 %v394
    %v1251 = vunpack.c.l.b16 %v395
    %v1252 = vunpack.c.l.b16 %v396
    %v1253 = vunpack.c.l.b16 %v397
    %v1254 = vunpack.c.l.b16 %v398
    %v1255 = vunpack.c.l.b16 %v399
    %v1256 = vunpack.c.l.b16 %v400
    %v1257 = vunpack.c.l.b16 %v401
    %v1258 = vunpack.c.l.b16 %v402
    %v1259 = vunpack.c.l.b16 %v403
    %v1260 = vunpack.c.l.b16 %v404
    %v1261 = vunpack.c.l.b16 %v405
    %v1262 = vunpack.c.l.b16 %v406
    %v1263 = vunpack.c.l.b16 %v407
    %v1264 = vunpack.c.l.b16 %v408
    %v1265 = vunpack.c.l.b16 %v409
    %v1266 = vunpack.c.l.b16 %v410
    %v1267 = vunpack.c.l.b16 %v411
    %v1268 = vunpack.c.l.b16 %v412
    %v1269 = vunpack.c.l.b16 %v413
    %v1270 = vunpack.c.l.b16 %v414
    %v1271 = vunpack.c.l.b16 %v415
    %v1272 = vunpack.c.l.b16 %v416
    %v1273 = vunpack.c.l.b16 %v417
    %v1274 = vunpack.c.l.b16 %v418
    %v1275 = vunpack.c.l.b16 %v419
    %v1276 = vunpack.c.l.b16 %v420
    %v1277 = vunpack.c.l.b16 %v421
    %v1278 = vunpack.c.l.b16 %v422
    %v1279 = vunpack.c.l.b16 %v423
    %v1280 = vunpack.c.l.b16 %v424
    %v1281 = vunpack.c.l.b16 %v425
    %v1282 = vpack.c.b16 %v899, %v898
    %v1283 = vpack.c.b16 %v901, %v900
    %v1284 = vpack.c.b16 %v903, %v902
    %v1285 = vpack.c.b16 %v905, %v904
    %v1286 = vpack.c.b16 %v907, %v906
    %v1287 = vpack.c.b16 %v909, %v908
    %v1288 = vpack.c.b16 %v911, %v910
    %v1289 = vpack.c.b16 %v913, %v912
    %v1290 = vpack.c.b16 %v915, %v914
    %v1291 = vpack.c.b16 %v917, %v916
    %v1292 = vpack.c.b16 %v919, %v918
    %v1293 = vpack.c.b16 %v921, %v920
    %v1294 = vpack.c.b16 %v923, %v922
    %v1295 = vpack.c.b16 %v925, %v924
    %v1296 = vpack.c.b16 %v927, %v926
    %v1297 = vpack.c.b16 %v929, %v928
    %v1298 = vpack.c.b16 %v931, %v930
    %v1299 = vpack.c.b16 %v933, %v932
    %v1300 = vpack.c.b16 %v935, %v934
    %v1301 = vpack.c.b16 %v937, %v936
    %v1302 = vpack.c.b16 %v939, %v938
    %v1303 = vpack.c.b16 %v941, %v940
    %v1304 = vpack.c.b16 %v943, %v942
    %v1305 = vpack.c.b16 %v945, %v944
    %v1306 = vpack.c.b16 %v947, %v946
    %v1307 = vpack.c.b16 %v949, %v948
    %v1308 = vpack.c.b16 %v951, %v950
    %v1309 = vpack.c.b16 %v953, %v952
    %v1310 = vpack.c.b16 %v955, %v954
    %v1311 = vpack.c.b16 %v957, %v956
    %v1312 = vpack.c.b16 %v959, %v958
    %v1313 = vpack.c.b16 %v961, %v960
    %v1314 = vpack.c.b16 %v963, %v962
    %v1315 = vpack.c.b16 %v965, %v964
    %v1316 = vpack.c.b16 %v967, %v966
    %v1317 = vpack.c.b16 %v969, %v968
    %v1318 = vpack.c.b16 %v971, %v970
    %v1319 = vpack.c.b16 %v973, %v972
    %v1320 = vpack.c.b16 %v975, %v974
    %v1321 = vpack.c.b16 %v977, %v976
    %v1322 = vpack.c.b16 %v979, %v978
    %v1323 = vpack.c.b16 %v981, %v980
    %v1324 = vpack.c.b16 %v983, %v982
    %v1325 = vpack.c.b16 %v985, %v984
    %v1326 = vpack.c.b16 %v987, %v986
    %v1327 = vpack.c.b16 %v989, %v988
    %v1328 = vpack.c.b16 %v991, %v990
    %v1329 = vpack.c.b16 %v993, %v992
    %v1330 = vpack.c.b16 %v995, %v994
    %v1331 = vpack.c.b16 %v997, %v996
    %v1332 = vpack.c.b16 %v999, %v998
    %v1333 = vpack.c.b16 %v1001, %v1000
    %v1334 = vpack.c.b16 %v1003, %v1002
    %v1335 = vpack.c.b16 %v1005, %v1004
    %v1336 = vpack.c.b16 %v1007, %v1006
    %v1337 = vpack.c.b16 %v1009, %v1008
    %v1338 = vpack.c.b16 %v1011, %v1010
    %v1339 = vpack.c.b16 %v1013, %v1012
    %v1340 = vpack.c.b16 %v1015, %v1014
    %v1341 = vpack.c.b16 %v1017, %v1016
    %v1342 = vpack.c.b16 %v1019, %v1018
    %v1343 = vpack.c.b16 %v1021, %v1020
    %v1344 = vpack.c.b16 %v1023, %v1022
    %v1345 = vpack.c.b16 %v1025, %v1024
    %v1346 = vpack.c.b16 %v1027, %v1026
    %v1347 = vpack.c.b16 %v1029, %v1028
    %v1348 = vpack.c.b16 %v1031, %v1030
    %v1349 = vpack.c.b16 %v1033, %v1032
    %v1350 = vpack.c.b16 %v1035, %v1034
    %v1351 = vpack.c.b16 %v1037, %v1036
    %v1352 = vpack.c.b16 %v1039, %v1038
    %v1353 = vpack.c.b16 %v1041, %v1040
    %v1354 = vpack.c.b16 %v1043, %v1042
    %v1355 = vpack.c.b16 %v1045, %v1044
    %v1356 = vpack.c.b16 %v1047, %v1046
    %v1357 = vpack.c.b16 %v1049, %v1048
    %v1358 = vpack.c.b16 %v1051, %v1050
    %v1359 = vpack.c.b16 %v1053, %v1052
    %v1360 = vpack.c.b16 %v1055, %v1054
    %v1361 = vpack.c.b16 %v1057, %v1056
    %v1362 = vpack.c.b16 %v1059, %v1058
    %v1363 = vpack.c.b16 %v1061, %v1060
    %v1364 = vpack.c.b16 %v1063, %v1062
    %v1365 = vpack.c.b16 %v1065, %v1064
    %v1366 = vpack.c.b16 %v1067, %v1066
    %v1367 = vpack.c.b16 %v1069, %v1068
    %v1368 = vpack.c.b16 %v1071, %v1070
    %v1369 = vpack.c.b16 %v1073, %v1072
    %v1370 = vpack.c.b16 %v1075, %v1074
    %v1371 = vpack.c.b16 %v1077, %v1076
    %v1372 = vpack.c.b16 %v1079, %v1078
    %v1373 = vpack.c.b16 %v1081, %v1080
    %v1374 = vpack.c.b16 %v1083, %v1082
    %v1375 = vpack.c.b16 %v1085, %v1084
    %v1376 = vpack.c.b16 %v1087, %v1086
    %v1377 = vpack.c.b16 %v1089, %v1088
    %v1378 = vpack.c.b16 %v1091, %v1090
    %v1379 = vpack.c.b16 %v1093, %v1092
    %v1380 = vpack.c.b16 %v1095, %v1094
    %v1381 = vpack.c.b16 %v1097, %v1096
    %v1382 = vpack.c.b16 %v1099, %v1098
    %v1383 = vpack.c.b16 %v1101, %v1100
    %v1384 = vpack.c.b16 %v1103, %v1102
    %v1385 = vpack.c.b16 %v1105, %v1104
    %v1386 = vpack.c.b16 %v1107, %v1106
    %v1387 = vpack.c.b16 %v1109, %v1108
    %v1388 = vpack.c.b16 %v1111, %v1110
    %v1389 = vpack.c.b16 %v1113, %v1112
    %v1390 = vpack.c.b16 %v1115, %v1114
    %v1391 = vpack.c.b16 %v1117, %v1116
    %v1392 = vpack.c.b16 %v1119, %v1118
    %v1393 = vpack.c.b16 %v1121, %v1120
    %v1394 = vpack.c.b16 %v1123, %v1122
    %v1395 = vpack.c.b16 %v1125, %v1124
    %v1396 = vpack.c.b16 %v1127, %v1126
    %v1397 = vpack.c.b16 %v1129, %v1128
    %v1398 = vpack.c.b16 %v1131, %v1130
    %v1399 = vpack.c.b16 %v1133, %v1132
    %v1400 = vpack.c.b16 %v1135, %v1134
    %v1401 = vpack.c.b16 %v1137, %v1136
    %v1402 = vpack.c.b16 %v1139, %v1138
    %v1403 = vpack.c.b16 %v1141, %v1140
    %v1404 = vpack.c.b16 %v1143, %v1142
    %v1405 = vpack.c.b16 %v1145, %v1144
    %v1406 = vpack.c.b16 %v1147, %v1146
    %v1407 = vpack.c.b16 %v1149, %v1148
    %v1408 = vpack.c.b16 %v1151, %v1150
    %v1409 = vpack.c.b16 %v1153, %v1152
    %v1410 = vpack.c.b16 %v1155, %v1154
    %v1411 = vpack.c.b16 %v1157, %v1156
    %v1412 = vpack.c.b16 %v1159, %v1158
    %v1413 = vpack.c.b16 %v1161, %v1160
    %v1414 = vpack.c.b16 %v1163, %v1162
    %v1415 = vpack.c.b16 %v1165, %v1164
    %v1416 = vpack.c.b16 %v1167, %v1166
    %v1417 = vpack.c.b16 %v1169, %v1168
    %v1418 = vpack.c.b16 %v1171, %v1170
    %v1419 = vpack.c.b16 %v1173, %v1172
    %v1420 = vpack.c.b16 %v1175, %v1174
    %v1421 = vpack.c.b16 %v1177, %v1176
    %v1422 = vpack.c.b16 %v1179, %v1178
    %v1423 = vpack.c.b16 %v1181, %v1180
    %v1424 = vpack.c.b16 %v1183, %v1182
    %v1425 = vpack.c.b16 %v1185, %v1184
    %v1426 = vpack.c.b16 %v1187, %v1186
    %v1427 = vpack.c.b16 %v1189, %v1188
    %v1428 = vpack.c.b16 %v1191, %v1190
    %v1429 = vpack.c.b16 %v1193, %v1192
    %v1430 = vpack.c.b16 %v1195, %v1194
    %v1431 = vpack.c.b16 %v1197, %v1196
    %v1432 = vpack.c.b16 %v1199, %v1198
    %v1433 = vpack.c.b16 %v1201, %v1200
    %v1434 = vpack.c.b16 %v1203, %v1202
    %v1435 = vpack.c.b16 %v1205, %v1204
    %v1436 = vpack.c.b16 %v1207, %v1206
    %v1437 = vpack.c.b16 %v1209, %v1208
    %v1438 = vpack.c.b16 %v1211, %v1210
    %v1439 = vpack.c.b16 %v1213, %v1212
    %v1440 = vpack.c.b16 %v1215, %v1214
    %v1441 = vpack.c.b16 %v1217, %v1216
    %v1442 = vpack.c.b16 %v1219, %v1218
    %v1443 = vpack.c.b16 %v1221, %v1220
    %v1444 = vpack.c.b16 %v1223, %v1222
    %v1445 = vpack.c.b16 %v1225, %v1224
    %v1446 = vpack.c.b16 %v1227, %v1226
    %v1447 = vpack.c.b16 %v1229, %v1228
    %v1448 = vpack.c.b16 %v1231, %v1230
    %v1449 = vpack.c.b16 %v1233, %v1232
    %v1450 = vpack.c.b16 %v1235, %v1234
    %v1451 = vpack.c.b16 %v1237, %v1236
    %v1452 = vpack.c.b16 %v1239, %v1238
    %v1453 = vpack.c.b16 %v1241, %v1240
    %v1454 = vpack.c.b16 %v1243, %v1242
    %v1455 = vpack.c.b16 %v1245, %v1244
    %v1456 = vpack.c.b16 %v1247, %v1246
    %v1457 = vpack.c.b16 %v1249, %v1248
    %v1458 = vpack.c.b16 %v1251, %v1250
    %v1459 = vpack.c.b16 %v1253, %v1252
    %v1460 = vpack.c.b16 %v1255, %v1254
    %v1461 = vpack.c.b16 %v1257, %v1256
    %v1462 = vpack.c.b16 %v1259, %v1258
    %v1463 = vpack.c.b16 %v1261, %v1260
    %v1464 = vpack.c.b16 %v1263, %v1262
    %v1465 = vpack.c.b16 %v1265, %v1264
    %v1466 = vpack.c.b16 %v1267, %v1266
    %v1467 = vpack.c.b16 %v1269, %v1268
    %v1468 = vpack.c.b16 %v1271, %v1270
    %v1469 = vpack.c.b16 %v1273, %v1272
    %v1470 = vpack.c.b16 %v1275, %v1274
    %v1471 = vpack.c.b16 %v1277, %v1276
    %v1472 = vpack.c.b16 %v1279, %v1278
    %v1473 = vpack.c.b16 %v1281, %v1280
    %1666 = vmatprep.subr.bf16.mxu0 0
    %1667 = vmatpush1.bf16.msra.mxu0 %v1282
    %1668 = vmatprep.subr.bf16.mxu0 0
    %1669 = vmatpush1.bf16.msra.mxu0 %v1283
    %1670 = vmatprep.subr.bf16.mxu0 0
    %1671 = vmatpush1.bf16.msra.mxu0 %v1284
    %1672 = vmatprep.subr.bf16.mxu0 0
    %1673 = vmatpush1.bf16.msra.mxu0 %v1285
    %1674 = vmatprep.subr.bf16.mxu0 0
    %1675 = vmatpush1.bf16.msra.mxu0 %v1286
    %1676 = vmatprep.subr.bf16.mxu0 0
    %1677 = vmatpush1.bf16.msra.mxu0 %v1287
    %1678 = vmatprep.subr.bf16.mxu0 0
    %1679 = vmatpush1.bf16.msra.mxu0 %v1288
    %1680 = vmatprep.subr.bf16.mxu0 0
    %1681 = vmatpush1.bf16.msra.mxu0 %v1289
    %1682 = vmatprep.subr.bf16.mxu0 0
    %1683 = vmatpush1.bf16.msra.mxu0 %v1290
    %1684 = vmatprep.subr.bf16.mxu0 0
    %1685 = vmatpush1.bf16.msra.mxu0 %v1291
    %1686 = vmatprep.subr.bf16.mxu0 0
    %1687 = vmatpush1.bf16.msra.mxu0 %v1292
    %1688 = vmatprep.subr.bf16.mxu0 0
    %1689 = vmatpush1.bf16.msra.mxu0 %v1293
    %1690 = vmatprep.subr.bf16.mxu0 0
    %1691 = vmatpush1.bf16.msra.mxu0 %v1294
    %1692 = vmatprep.subr.bf16.mxu0 0
    %1693 = vmatpush1.bf16.msra.mxu0 %v1295
    %1694 = vmatprep.subr.bf16.mxu0 0
    %1695 = vmatpush1.bf16.msra.mxu0 %v1296
    %1696 = vmatprep.subr.bf16.mxu0 0
    %1697 = vmatpush1.bf16.msra.mxu0 %v1297
    %1698 = vmatprep.mubr.bf16.mxu0 %v467
    %1699 = vmatmul.mubr.bf16.gmra.mrb[0].mxu0 %v466
    %v1700 = vpop.f32.mrb[0].mxu0
    %v1701 = vadd.f32 %v429, %v1700
    %v1702 = vpop.f32.mrb[0].mxu0
    %v1703 = vpop.f32.mrb[0].mxu0
    %v1704 = vpop.f32.mrb[0].mxu0
    %1705 = vdwg.mxu0
    %1706 = vmatprep.subr.bf16.mxu0 0
    %1707 = vmatpush1.bf16.msra.mxu0 %v1298
    %1708 = vmatprep.subr.bf16.mxu0 0
    %1709 = vmatpush1.bf16.msra.mxu0 %v1299
    %1710 = vmatprep.subr.bf16.mxu0 0
    %1711 = vmatpush1.bf16.msra.mxu0 %v1300
    %1712 = vmatprep.subr.bf16.mxu0 0
    %1713 = vmatpush1.bf16.msra.mxu0 %v1301
    %1714 = vmatprep.subr.bf16.mxu0 0
    %1715 = vmatpush1.bf16.msra.mxu0 %v1302
    %1716 = vmatprep.subr.bf16.mxu0 0
    %1717 = vmatpush1.bf16.msra.mxu0 %v1303
    %1718 = vmatprep.subr.bf16.mxu0 0
    %1719 = vmatpush1.bf16.msra.mxu0 %v1304
    %1720 = vmatprep.subr.bf16.mxu0 0
    %1721 = vmatpush1.bf16.msra.mxu0 %v1305
    %1722 = vmatprep.subr.bf16.mxu0 0
    %1723 = vmatpush1.bf16.msra.mxu0 %v1306
    %1724 = vmatprep.subr.bf16.mxu0 0
    %1725 = vmatpush1.bf16.msra.mxu0 %v1307
    %1726 = vmatprep.subr.bf16.mxu0 0
    %1727 = vmatpush1.bf16.msra.mxu0 %v1308
    %1728 = vmatprep.subr.bf16.mxu0 0
    %1729 = vmatpush1.bf16.msra.mxu0 %v1309
    %1730 = vmatprep.subr.bf16.mxu0 0
    %1731 = vmatpush1.bf16.msra.mxu0 %v1310
    %1732 = vmatprep.subr.bf16.mxu0 0
    %1733 = vmatpush1.bf16.msra.mxu0 %v1311
    %1734 = vmatprep.subr.bf16.mxu0 0
    %1735 = vmatpush1.bf16.msra.mxu0 %v1312
    %1736 = vmatprep.subr.bf16.mxu0 0
    %1737 = vmatpush1.bf16.msra.mxu0 %v1313
    %1738 = vmatprep.mubr.bf16.mxu0 %v469
    %1739 = vmatmul.mubr.bf16.gmra.mrb[0].mxu0 %v468
    %v1740 = vpop.f32.mrb[0].mxu0
    %v1741 = vadd.f32 %v1701, %v1740
    %v1742 = vpop.f32.mrb[0].mxu0
    %v1743 = vpop.f32.mrb[0].mxu0
    %v1744 = vpop.f32.mrb[0].mxu0
    %1745 = vdwg.mxu0
    %1746 = vmatprep.subr.bf16.mxu0 0
    %1747 = vmatpush1.bf16.msra.mxu0 %v1314
    %1748 = vmatprep.subr.bf16.mxu0 0
    %1749 = vmatpush1.bf16.msra.mxu0 %v1315
    %1750 = vmatprep.subr.bf16.mxu0 0
    %1751 = vmatpush1.bf16.msra.mxu0 %v1316
    %1752 = vmatprep.subr.bf16.mxu0 0
    %1753 = vmatpush1.bf16.msra.mxu0 %v1317
    %1754 = vmatprep.subr.bf16.mxu0 0
    %1755 = vmatpush1.bf16.msra.mxu0 %v1318
    %1756 = vmatprep.subr.bf16.mxu0 0
    %1757 = vmatpush1.bf16.msra.mxu0 %v1319
    %1758 = vmatprep.subr.bf16.mxu0 0
    %1759 = vmatpush1.bf16.msra.mxu0 %v1320
    %1760 = vmatprep.subr.bf16.mxu0 0
    %1761 = vmatpush1.bf16.msra.mxu0 %v1321
    %1762 = vmatprep.subr.bf16.mxu0 0
    %1763 = vmatpush1.bf16.msra.mxu0 %v1322
    %1764 = vmatprep.subr.bf16.mxu0 0
    %1765 = vmatpush1.bf16.msra.mxu0 %v1323
    %1766 = vmatprep.subr.bf16.mxu0 0
    %1767 = vmatpush1.bf16.msra.mxu0 %v1324
    %1768 = vmatprep.subr.bf16.mxu0 0
    %1769 = vmatpush1.bf16.msra.mxu0 %v1325
    %1770 = vmatprep.subr.bf16.mxu0 0
    %1771 = vmatpush1.bf16.msra.mxu0 %v1326
    %1772 = vmatprep.subr.bf16.mxu0 0
    %1773 = vmatpush1.bf16.msra.mxu0 %v1327
    %1774 = vmatprep.subr.bf16.mxu0 0
    %1775 = vmatpush1.bf16.msra.mxu0 %v1328
    %1776 = vmatprep.subr.bf16.mxu0 0
    %1777 = vmatpush1.bf16.msra.mxu0 %v1329
    %1778 = vmatprep.mubr.bf16.mxu0 %v471
    %1779 = vmatmul.mubr.bf16.gmra.mrb[0].mxu0 %v470
    %v1780 = vpop.f32.mrb[0].mxu0
    %v1781 = vadd.f32 %v1741, %v1780
    %v1782 = vpop.f32.mrb[0].mxu0
    %v1783 = vpop.f32.mrb[0].mxu0
    %v1784 = vpop.f32.mrb[0].mxu0
    %1785 = vdwg.mxu0
    %1786 = vmatprep.subr.bf16.mxu0 0
    %1787 = vmatpush1.bf16.msra.mxu0 %v1330
    %1788 = vmatprep.subr.bf16.mxu0 0
    %1789 = vmatpush1.bf16.msra.mxu0 %v1331
    %1790 = vmatprep.subr.bf16.mxu0 0
    %1791 = vmatpush1.bf16.msra.mxu0 %v1332
    %1792 = vmatprep.subr.bf16.mxu0 0
    %1793 = vmatpush1.bf16.msra.mxu0 %v1333
    %1794 = vmatprep.subr.bf16.mxu0 0
    %1795 = vmatpush1.bf16.msra.mxu0 %v1334
    %1796 = vmatprep.subr.bf16.mxu0 0
    %1797 = vmatpush1.bf16.msra.mxu0 %v1335
    %1798 = vmatprep.subr.bf16.mxu0 0
    %1799 = vmatpush1.bf16.msra.mxu0 %v1336
    %1800 = vmatprep.subr.bf16.mxu0 0
    %1801 = vmatpush1.bf16.msra.mxu0 %v1337
    %1802 = vmatprep.subr.bf16.mxu0 0
    %1803 = vmatpush1.bf16.msra.mxu0 %v1338
    %1804 = vmatprep.subr.bf16.mxu0 0
    %1805 = vmatpush1.bf16.msra.mxu0 %v1339
    %1806 = vmatprep.subr.bf16.mxu0 0
    %1807 = vmatpush1.bf16.msra.mxu0 %v1340
    %1808 = vmatprep.subr.bf16.mxu0 0
    %1809 = vmatpush1.bf16.msra.mxu0 %v1341
    %1810 = vmatprep.subr.bf16.mxu0 0
    %1811 = vmatpush1.bf16.msra.mxu0 %v1342
    %1812 = vmatprep.subr.bf16.mxu0 0
    %1813 = vmatpush1.bf16.msra.mxu0 %v1343
    %1814 = vmatprep.subr.bf16.mxu0 0
    %1815 = vmatpush1.bf16.msra.mxu0 %v1344
    %1816 = vmatprep.subr.bf16.mxu0 0
    %1817 = vmatpush1.bf16.msra.mxu0 %v1345
    %1818 = vmatprep.mubr.bf16.mxu0 %v473
    %1819 = vmatmul.mubr.bf16.gmra.mrb[0].mxu0 %v472
    %v1820 = vpop.f32.mrb[0].mxu0
    %v1821 = vadd.f32 %v1781, %v1820
    %v1822 = vpop.f32.mrb[0].mxu0
    %v1823 = vpop.f32.mrb[0].mxu0
    %v1824 = vpop.f32.mrb[0].mxu0
    %1825 = vdwg.mxu0
    %1826 = vmatprep.subr.bf16.mxu0 0
    %1827 = vmatpush1.bf16.msra.mxu0 %v1346
    %1828 = vmatprep.subr.bf16.mxu0 0
    %1829 = vmatpush1.bf16.msra.mxu0 %v1347
    %1830 = vmatprep.subr.bf16.mxu0 0
    %1831 = vmatpush1.bf16.msra.mxu0 %v1348
    %1832 = vmatprep.subr.bf16.mxu0 0
    %1833 = vmatpush1.bf16.msra.mxu0 %v1349
    %1834 = vmatprep.subr.bf16.mxu0 0
    %1835 = vmatpush1.bf16.msra.mxu0 %v1350
    %1836 = vmatprep.subr.bf16.mxu0 0
    %1837 = vmatpush1.bf16.msra.mxu0 %v1351
    %1838 = vmatprep.subr.bf16.mxu0 0
    %1839 = vmatpush1.bf16.msra.mxu0 %v1352
    %1840 = vmatprep.subr.bf16.mxu0 0
    %1841 = vmatpush1.bf16.msra.mxu0 %v1353
    %1842 = vmatprep.subr.bf16.mxu0 0
    %1843 = vmatpush1.bf16.msra.mxu0 %v1354
    %1844 = vmatprep.subr.bf16.mxu0 0
    %1845 = vmatpush1.bf16.msra.mxu0 %v1355
    %1846 = vmatprep.subr.bf16.mxu0 0
    %1847 = vmatpush1.bf16.msra.mxu0 %v1356
    %1848 = vmatprep.subr.bf16.mxu0 0
    %1849 = vmatpush1.bf16.msra.mxu0 %v1357
    %1850 = vmatprep.subr.bf16.mxu0 0
    %1851 = vmatpush1.bf16.msra.mxu0 %v1358
    %1852 = vmatprep.subr.bf16.mxu0 0
    %1853 = vmatpush1.bf16.msra.mxu0 %v1359
    %1854 = vmatprep.subr.bf16.mxu0 0
    %1855 = vmatpush1.bf16.msra.mxu0 %v1360
    %1856 = vmatprep.subr.bf16.mxu0 0
    %1857 = vmatpush1.bf16.msra.mxu0 %v1361
    %1858 = vmatprep.mubr.bf16.mxu0 %v475
    %1859 = vmatmul.mubr.bf16.gmra.mrb[0].mxu0 %v474
    %v1860 = vpop.f32.mrb[0].mxu0
    %v1861 = vadd.f32 %v1821, %v1860
    %v1862 = vpop.f32.mrb[0].mxu0
    %v1863 = vpop.f32.mrb[0].mxu0
    %v1864 = vpop.f32.mrb[0].mxu0
    %1865 = vdwg.mxu0
    %1866 = vmatprep.subr.bf16.mxu0 0
    %1867 = vmatpush1.bf16.msra.mxu0 %v1362
    %1868 = vmatprep.subr.bf16.mxu0 0
    %1869 = vmatpush1.bf16.msra.mxu0 %v1363
    %1870 = vmatprep.subr.bf16.mxu0 0
    %1871 = vmatpush1.bf16.msra.mxu0 %v1364
    %1872 = vmatprep.subr.bf16.mxu0 0
    %1873 = vmatpush1.bf16.msra.mxu0 %v1365
    %1874 = vmatprep.subr.bf16.mxu0 0
    %1875 = vmatpush1.bf16.msra.mxu0 %v1366
    %1876 = vmatprep.subr.bf16.mxu0 0
    %1877 = vmatpush1.bf16.msra.mxu0 %v1367
    %1878 = vmatprep.subr.bf16.mxu0 0
    %1879 = vmatpush1.bf16.msra.mxu0 %v1368
    %1880 = vmatprep.subr.bf16.mxu0 0
    %1881 = vmatpush1.bf16.msra.mxu0 %v1369
    %1882 = vmatprep.subr.bf16.mxu0 0
    %1883 = vmatpush1.bf16.msra.mxu0 %v1370
    %1884 = vmatprep.subr.bf16.mxu0 0
    %1885 = vmatpush1.bf16.msra.mxu0 %v1371
    %1886 = vmatprep.subr.bf16.mxu0 0
    %1887 = vmatpush1.bf16.msra.mxu0 %v1372
    %1888 = vmatprep.subr.bf16.mxu0 0
    %1889 = vmatpush1.bf16.msra.mxu0 %v1373
    %1890 = vmatprep.subr.bf16.mxu0 0
    %1891 = vmatpush1.bf16.msra.mxu0 %v1374
    %1892 = vmatprep.subr.bf16.mxu0 0
    %1893 = vmatpush1.bf16.msra.mxu0 %v1375
    %1894 = vmatprep.subr.bf16.mxu0 0
    %1895 = vmatpush1.bf16.msra.mxu0 %v1376
    %1896 = vmatprep.subr.bf16.mxu0 0
    %1897 = vmatpush1.bf16.msra.mxu0 %v1377
    %1898 = vmatprep.mubr.bf16.mxu0 %v477
    %1899 = vmatmul.mubr.bf16.gmra.mrb[0].mxu0 %v476
    %v1900 = vpop.f32.mrb[0].mxu0
    %v1901 = vadd.f32 %v1861, %v1900
    %v1902 = vpop.f32.mrb[0].mxu0
    %v1903 = vpop.f32.mrb[0].mxu0
    %v1904 = vpop.f32.mrb[0].mxu0
    %1905 = vdwg.mxu0
    %1906 = vmatprep.subr.bf16.mxu0 0
    %1907 = vmatpush1.bf16.msra.mxu0 %v1378
    %1908 = vmatprep.subr.bf16.mxu0 0
    %1909 = vmatpush1.bf16.msra.mxu0 %v1379
    %1910 = vmatprep.subr.bf16.mxu0 0
    %1911 = vmatpush1.bf16.msra.mxu0 %v1380
    %1912 = vmatprep.subr.bf16.mxu0 0
    %1913 = vmatpush1.bf16.msra.mxu0 %v1381
    %1914 = vmatprep.subr.bf16.mxu0 0
    %1915 = vmatpush1.bf16.msra.mxu0 %v1382
    %1916 = vmatprep.subr.bf16.mxu0 0
    %1917 = vmatpush1.bf16.msra.mxu0 %v1383
    %1918 = vmatprep.subr.bf16.mxu0 0
    %1919 = vmatpush1.bf16.msra.mxu0 %v1384
    %1920 = vmatprep.subr.bf16.mxu0 0
    %1921 = vmatpush1.bf16.msra.mxu0 %v1385
    %1922 = vmatprep.subr.bf16.mxu0 0
    %1923 = vmatpush1.bf16.msra.mxu0 %v1386
    %1924 = vmatprep.subr.bf16.mxu0 0
    %1925 = vmatpush1.bf16.msra.mxu0 %v1387
    %1926 = vmatprep.subr.bf16.mxu0 0
    %1927 = vmatpush1.bf16.msra.mxu0 %v1388
    %1928 = vmatprep.subr.bf16.mxu0 0
    %1929 = vmatpush1.bf16.msra.mxu0 %v1389
    %1930 = vmatprep.subr.bf16.mxu0 0
    %1931 = vmatpush1.bf16.msra.mxu0 %v1390
    %1932 = vmatprep.subr.bf16.mxu0 0
    %1933 = vmatpush1.bf16.msra.mxu0 %v1391
    %1934 = vmatprep.subr.bf16.mxu0 0
    %1935 = vmatpush1.bf16.msra.mxu0 %v1392
    %1936 = vmatprep.subr.bf16.mxu0 0
    %1937 = vmatpush1.bf16.msra.mxu0 %v1393
    %1938 = vmatprep.mubr.bf16.mxu0 %v479
    %1939 = vmatmul.mubr.bf16.gmra.mrb[0].mxu0 %v478
    %v1940 = vpop.f32.mrb[0].mxu0
    %v1941 = vadd.f32 %v1901, %v1940
    %v1942 = vpop.f32.mrb[0].mxu0
    %v1943 = vpop.f32.mrb[0].mxu0
    %v1944 = vpop.f32.mrb[0].mxu0
    %1945 = vdwg.mxu0
    %1946 = vmatprep.subr.bf16.mxu0 0
    %1947 = vmatpush1.bf16.msra.mxu0 %v1394
    %1948 = vmatprep.subr.bf16.mxu0 0
    %1949 = vmatpush1.bf16.msra.mxu0 %v1395
    %1950 = vmatprep.subr.bf16.mxu0 0
    %1951 = vmatpush1.bf16.msra.mxu0 %v1396
    %1952 = vmatprep.subr.bf16.mxu0 0
    %1953 = vmatpush1.bf16.msra.mxu0 %v1397
    %1954 = vmatprep.subr.bf16.mxu0 0
    %1955 = vmatpush1.bf16.msra.mxu0 %v1398
    %1956 = vmatprep.subr.bf16.mxu0 0
    %1957 = vmatpush1.bf16.msra.mxu0 %v1399
    %1958 = vmatprep.subr.bf16.mxu0 0
    %1959 = vmatpush1.bf16.msra.mxu0 %v1400
    %1960 = vmatprep.subr.bf16.mxu0 0
    %1961 = vmatpush1.bf16.msra.mxu0 %v1401
    %1962 = vmatprep.subr.bf16.mxu0 0
    %1963 = vmatpush1.bf16.msra.mxu0 %v1402
    %1964 = vmatprep.subr.bf16.mxu0 0
    %1965 = vmatpush1.bf16.msra.mxu0 %v1403
    %1966 = vmatprep.subr.bf16.mxu0 0
    %1967 = vmatpush1.bf16.msra.mxu0 %v1404
    %1968 = vmatprep.subr.bf16.mxu0 0
    %1969 = vmatpush1.bf16.msra.mxu0 %v1405
    %1970 = vmatprep.subr.bf16.mxu0 0
    %1971 = vmatpush1.bf16.msra.mxu0 %v1406
    %1972 = vmatprep.subr.bf16.mxu0 0
    %1973 = vmatpush1.bf16.msra.mxu0 %v1407
    %1974 = vmatprep.subr.bf16.mxu0 0
    %1975 = vmatpush1.bf16.msra.mxu0 %v1408
    %1976 = vmatprep.subr.bf16.mxu0 0
    %1977 = vmatpush1.bf16.msra.mxu0 %v1409
    %1978 = vmatprep.mubr.bf16.mxu0 %v481
    %1979 = vmatmul.mubr.bf16.gmra.mrb[0].mxu0 %v480
    %v1980 = vpop.f32.mrb[0].mxu0
    %v1981 = vadd.f32 %v1941, %v1980
    %v1982 = vpop.f32.mrb[0].mxu0
    %v1983 = vpop.f32.mrb[0].mxu0
    %v1984 = vpop.f32.mrb[0].mxu0
    %1985 = vdwg.mxu0
    %1986 = vmatprep.subr.bf16.mxu0 0
    %1987 = vmatpush1.bf16.msra.mxu0 %v1410
    %1988 = vmatprep.subr.bf16.mxu0 0
    %1989 = vmatpush1.bf16.msra.mxu0 %v1411
    %1990 = vmatprep.subr.bf16.mxu0 0
    %1991 = vmatpush1.bf16.msra.mxu0 %v1412
    %1992 = vmatprep.subr.bf16.mxu0 0
    %1993 = vmatpush1.bf16.msra.mxu0 %v1413
    %1994 = vmatprep.subr.bf16.mxu0 0
    %1995 = vmatpush1.bf16.msra.mxu0 %v1414
    %1996 = vmatprep.subr.bf16.mxu0 0
    %1997 = vmatpush1.bf16.msra.mxu0 %v1415
    %1998 = vmatprep.subr.bf16.mxu0 0
    %1999 = vmatpush1.bf16.msra.mxu0 %v1416
    %2000 = vmatprep.subr.bf16.mxu0 0
    %2001 = vmatpush1.bf16.msra.mxu0 %v1417
    %2002 = vmatprep.subr.bf16.mxu0 0
    %2003 = vmatpush1.bf16.msra.mxu0 %v1418
    %2004 = vmatprep.subr.bf16.mxu0 0
    %2005 = vmatpush1.bf16.msra.mxu0 %v1419
    %2006 = vmatprep.subr.bf16.mxu0 0
    %2007 = vmatpush1.bf16.msra.mxu0 %v1420
    %2008 = vmatprep.subr.bf16.mxu0 0
    %2009 = vmatpush1.bf16.msra.mxu0 %v1421
    %2010 = vmatprep.subr.bf16.mxu0 0
    %2011 = vmatpush1.bf16.msra.mxu0 %v1422
    %2012 = vmatprep.subr.bf16.mxu0 0
    %2013 = vmatpush1.bf16.msra.mxu0 %v1423
    %2014 = vmatprep.subr.bf16.mxu0 0
    %2015 = vmatpush1.bf16.msra.mxu0 %v1424
    %2016 = vmatprep.subr.bf16.mxu0 0
    %2017 = vmatpush1.bf16.msra.mxu0 %v1425
    %2018 = vmatprep.mubr.bf16.mxu0 %v483
    %2019 = vmatmul.mubr.bf16.gmra.mrb[0].mxu0 %v482
    %v2020 = vpop.f32.mrb[0].mxu0
    %v2021 = vadd.f32 %v1981, %v2020
    %v2022 = vpop.f32.mrb[0].mxu0
    %v2023 = vpop.f32.mrb[0].mxu0
    %v2024 = vpop.f32.mrb[0].mxu0
    %2025 = vdwg.mxu0
    %2026 = vmatprep.subr.bf16.mxu0 0
    %2027 = vmatpush1.bf16.msra.mxu0 %v1426
    %2028 = vmatprep.subr.bf16.mxu0 0
    %2029 = vmatpush1.bf16.msra.mxu0 %v1427
    %2030 = vmatprep.subr.bf16.mxu0 0
    %2031 = vmatpush1.bf16.msra.mxu0 %v1428
    %2032 = vmatprep.subr.bf16.mxu0 0
    %2033 = vmatpush1.bf16.msra.mxu0 %v1429
    %2034 = vmatprep.subr.bf16.mxu0 0
    %2035 = vmatpush1.bf16.msra.mxu0 %v1430
    %2036 = vmatprep.subr.bf16.mxu0 0
    %2037 = vmatpush1.bf16.msra.mxu0 %v1431
    %2038 = vmatprep.subr.bf16.mxu0 0
    %2039 = vmatpush1.bf16.msra.mxu0 %v1432
    %2040 = vmatprep.subr.bf16.mxu0 0
    %2041 = vmatpush1.bf16.msra.mxu0 %v1433
    %2042 = vmatprep.subr.bf16.mxu0 0
    %2043 = vmatpush1.bf16.msra.mxu0 %v1434
    %2044 = vmatprep.subr.bf16.mxu0 0
    %2045 = vmatpush1.bf16.msra.mxu0 %v1435
    %2046 = vmatprep.subr.bf16.mxu0 0
    %2047 = vmatpush1.bf16.msra.mxu0 %v1436
    %2048 = vmatprep.subr.bf16.mxu0 0
    %2049 = vmatpush1.bf16.msra.mxu0 %v1437
    %2050 = vmatprep.subr.bf16.mxu0 0
    %2051 = vmatpush1.bf16.msra.mxu0 %v1438
    %2052 = vmatprep.subr.bf16.mxu0 0
    %2053 = vmatpush1.bf16.msra.mxu0 %v1439
    %2054 = vmatprep.subr.bf16.mxu0 0
    %2055 = vmatpush1.bf16.msra.mxu0 %v1440
    %2056 = vmatprep.subr.bf16.mxu0 0
    %2057 = vmatpush1.bf16.msra.mxu0 %v1441
    %2058 = vmatprep.mubr.bf16.mxu0 %v485
    %2059 = vmatmul.mubr.bf16.gmra.mrb[0].mxu0 %v484
    %v2060 = vpop.f32.mrb[0].mxu0
    %v2061 = vadd.f32 %v2021, %v2060
    %v2062 = vpop.f32.mrb[0].mxu0
    %v2063 = vpop.f32.mrb[0].mxu0
    %v2064 = vpop.f32.mrb[0].mxu0
    %2065 = vdwg.mxu0
    %2066 = vmatprep.subr.bf16.mxu0 0
    %2067 = vmatpush1.bf16.msra.mxu0 %v1442
    %2068 = vmatprep.subr.bf16.mxu0 0
    %2069 = vmatpush1.bf16.msra.mxu0 %v1443
    %2070 = vmatprep.subr.bf16.mxu0 0
    %2071 = vmatpush1.bf16.msra.mxu0 %v1444
    %2072 = vmatprep.subr.bf16.mxu0 0
    %2073 = vmatpush1.bf16.msra.mxu0 %v1445
    %2074 = vmatprep.subr.bf16.mxu0 0
    %2075 = vmatpush1.bf16.msra.mxu0 %v1446
    %2076 = vmatprep.subr.bf16.mxu0 0
    %2077 = vmatpush1.bf16.msra.mxu0 %v1447
    %2078 = vmatprep.subr.bf16.mxu0 0
    %2079 = vmatpush1.bf16.msra.mxu0 %v1448
    %2080 = vmatprep.subr.bf16.mxu0 0
    %2081 = vmatpush1.bf16.msra.mxu0 %v1449
    %2082 = vmatprep.subr.bf16.mxu0 0
    %2083 = vmatpush1.bf16.msra.mxu0 %v1450
    %2084 = vmatprep.subr.bf16.mxu0 0
    %2085 = vmatpush1.bf16.msra.mxu0 %v1451
    %2086 = vmatprep.subr.bf16.mxu0 0
    %2087 = vmatpush1.bf16.msra.mxu0 %v1452
    %2088 = vmatprep.subr.bf16.mxu0 0
    %2089 = vmatpush1.bf16.msra.mxu0 %v1453
    %2090 = vmatprep.subr.bf16.mxu0 0
    %2091 = vmatpush1.bf16.msra.mxu0 %v1454
    %2092 = vmatprep.subr.bf16.mxu0 0
    %2093 = vmatpush1.bf16.msra.mxu0 %v1455
    %2094 = vmatprep.subr.bf16.mxu0 0
    %2095 = vmatpush1.bf16.msra.mxu0 %v1456
    %2096 = vmatprep.subr.bf16.mxu0 0
    %2097 = vmatpush1.bf16.msra.mxu0 %v1457
    %2098 = vmatprep.mubr.bf16.mxu0 %v487
    %2099 = vmatmul.mubr.bf16.gmra.mrb[0].mxu0 %v486
    %v2100 = vpop.f32.mrb[0].mxu0
    %v2101 = vadd.f32 %v2061, %v2100
    %v2102 = vpop.f32.mrb[0].mxu0
    %v2103 = vpop.f32.mrb[0].mxu0
    %v2104 = vpop.f32.mrb[0].mxu0
    %2105 = vdwg.mxu0
    %2106 = vmatprep.subr.bf16.mxu0 0
    %2107 = vmatpush1.bf16.msra.mxu0 %v1458
    %2108 = vmatprep.subr.bf16.mxu0 0
    %2109 = vmatpush1.bf16.msra.mxu0 %v1459
    %2110 = vmatprep.subr.bf16.mxu0 0
    %2111 = vmatpush1.bf16.msra.mxu0 %v1460
    %2112 = vmatprep.subr.bf16.mxu0 0
    %2113 = vmatpush1.bf16.msra.mxu0 %v1461
    %2114 = vmatprep.subr.bf16.mxu0 0
    %2115 = vmatpush1.bf16.msra.mxu0 %v1462
    %2116 = vmatprep.subr.bf16.mxu0 0
    %2117 = vmatpush1.bf16.msra.mxu0 %v1463
    %2118 = vmatprep.subr.bf16.mxu0 0
    %2119 = vmatpush1.bf16.msra.mxu0 %v1464
    %2120 = vmatprep.subr.bf16.mxu0 0
    %2121 = vmatpush1.bf16.msra.mxu0 %v1465
    %2122 = vmatprep.subr.bf16.mxu0 0
    %2123 = vmatpush1.bf16.msra.mxu0 %v1466
    %2124 = vmatprep.subr.bf16.mxu0 0
    %2125 = vmatpush1.bf16.msra.mxu0 %v1467
    %2126 = vmatprep.subr.bf16.mxu0 0
    %2127 = vmatpush1.bf16.msra.mxu0 %v1468
    %2128 = vmatprep.subr.bf16.mxu0 0
    %2129 = vmatpush1.bf16.msra.mxu0 %v1469
    %2130 = vmatprep.subr.bf16.mxu0 0
    %2131 = vmatpush1.bf16.msra.mxu0 %v1470
    %2132 = vmatprep.subr.bf16.mxu0 0
    %2133 = vmatpush1.bf16.msra.mxu0 %v1471
    %2134 = vmatprep.subr.bf16.mxu0 0
    %2135 = vmatpush1.bf16.msra.mxu0 %v1472
    %2136 = vmatprep.subr.bf16.mxu0 0
    %2137 = vmatpush1.bf16.msra.mxu0 %v1473
    %2138 = vmatprep.mubr.bf16.mxu0 %v489
    %2139 = vmatmul.mubr.bf16.gmra.mrb[0].mxu0 %v488
    %v2140 = vpop.f32.mrb[0].mxu0
    %v2141 = vadd.f32 %v2101, %v2140
    %v2142 = vpop.f32.mrb[0].mxu0
    %v2143 = vpop.f32.mrb[0].mxu0
    %v2144 = vpop.f32.mrb[0].mxu0
    %2145 = vdwg.mxu0
    %v2146 = vmax.f32 %v2141, 0.0
    %v2147 = vpack.c.bf16 %v2146, %v2146
    %v2148 = vld [vmem:[%s5] sm:$0xf]
    %v2149 = vld [vmem:[%s5 + $0x4] sm:$0xf]
    %v2150 = vld [vmem:[%s5 + $0x8] sm:$0xf]
    %v2151 = vld [vmem:[%s5 + $0xc] sm:$0xf]
    %v2152 = vld [vmem:[%s5 + $0x10] sm:$0xf]
    %v2153 = vld [vmem:[%s5 + $0x14] sm:$0xf]
    %v2154 = vld [vmem:[%s5 + $0x18] sm:$0xf]
    %v2155 = vld [vmem:[%s5 + $0x1c] sm:$0xf]
    %v2156 = vlaneseq
    %v2157 = vshrl.u32 %v2156, 7
    %v2158 = vsub.s32 0, %v2157
    %v2159 = vrot.slane %v29, %v2158
    %v2168 = vunpack.c.l.b16 %v2148
    %v2169 = vunpack.c.l.b16 %v2149
    %v2170 = vunpack.c.l.b16 %v2150
    %v2171 = vunpack.c.l.b16 %v2151
    %v2172 = vunpack.c.l.b16 %v2152
    %v2173 = vunpack.c.l.b16 %v2153
    %v2174 = vunpack.c.l.b16 %v2154
    %v2175 = vunpack.c.l.b16 %v2155
    %v2176 = vpack.c.b16 %v2169, %v2168
    %v2177 = vpack.c.b16 %v2171, %v2170
    %v2178 = vpack.c.b16 %v2173, %v2172
    %v2179 = vpack.c.b16 %v2175, %v2174
    %vm2184 = vcmask 523264
    %v2186 = vsel %vm2184, %v2147, 0
    %2188 = vmatprep.subr.bf16.mxu0 0
    %2189 = vmatpush1.bf16.msra.mxu0 %v2176
    %2190 = vmatprep.subr.bf16.mxu0 0
    %2191 = vmatpush1.bf16.msra.mxu0 %v2177
    %2192 = vmatprep.subr.bf16.mxu0 0
    %2193 = vmatpush1.bf16.msra.mxu0 %v2178
    %2194 = vmatprep.subr.bf16.mxu0 0
    %2195 = vmatpush1.bf16.msra.mxu0 %v2179
    %2196 = vmatprep.subr.bf16.mxu0 0
    %2197 = vmatpush1.bf16.msra.mxu0 0
    %2198 = vmatprep.subr.bf16.mxu0 0
    %2199 = vmatpush1.bf16.msra.mxu0 0
    %2200 = vmatprep.subr.bf16.mxu0 0
    %2201 = vmatpush1.bf16.msra.mxu0 0
    %2202 = vmatprep.subr.bf16.mxu0 0
    %2203 = vmatpush1.bf16.msra.mxu0 0
    %2204 = vmatprep.subr.bf16.mxu0 0
    %2205 = vmatpush1.bf16.msra.mxu0 0
    %2206 = vmatprep.subr.bf16.mxu0 0
    %2207 = vmatpush1.bf16.msra.mxu0 0
    %2208 = vmatprep.subr.bf16.mxu0 0
    %2209 = vmatpush1.bf16.msra.mxu0 0
    %2210 = vmatprep.subr.bf16.mxu0 0
    %2211 = vmatpush1.bf16.msra.mxu0 0
    %2212 = vmatprep.subr.bf16.mxu0 0
    %2213 = vmatpush1.bf16.msra.mxu0 0
    %2214 = vmatprep.subr.bf16.mxu0 0
    %2215 = vmatpush1.bf16.msra.mxu0 0
    %2216 = vmatprep.subr.bf16.mxu0 0
    %2217 = vmatpush1.bf16.msra.mxu0 0
    %2218 = vmatprep.subr.bf16.mxu0 0
    %2219 = vmatpush1.bf16.msra.mxu0 0
    %2220 = vmatprep.mubr.bf16.mxu0 0
    %2221 = vmatmul.mubr.bf16.gmra.mrb[0].mxu0 %v2186
    %v2222 = vpop.f32.mrb[0].mxu0
    %v2223 = vadd.f32 %v2159, %v2222
    %v2224 = vpop.f32.mrb[0].mxu0
    %v2225 = vpop.f32.mrb[0].mxu0
    %v2226 = vpop.f32.mrb[0].mxu0
    %2227 = vdwg.mxu0
    %vm2228 = vcmask 80896
    %v2229 = vsel %vm2228, %v2223, -inf
    %2230 = vmax.xlane.f32.xlu0 %v2229
    %v2231 = vpop.xlane.xlu0 %2230
    %v2232 = vlaneseq
    %v2233 = vand.u32 %v2232, 127
    %vm2234 = vcmp.eq.f32.partialorder %v2223, %v2231
    %v2235 = vsel %vm2234, %v2233, 10
    %v2236 = vsel %vm2228, %v2235, 2147483647
    %v2237 = vand.u32 %v2236, 65535
    %v2238 = vshra.s32 %v2236, 16
    %v2239 = vcvt.s32.f32 %v2237
    %v2240 = vcvt.s32.f32 %v2238
    %2241 = vmin.xlane.f32.xlu0 %v2240
    %v2242 = vpop.xlane.xlu0 %2241
    %vm2243 = vcmp.eq.f32.partialorder %v2240, %v2242
    %v2244 = vsel %vm2243, %v2239, inf
    %2245 = vmin.xlane.f32.xlu0 %v2244
    %v2246 = vpop.xlane.xlu0 %2245
    %v2247 = vcvt.f32.s32 %v2246
    %v2248 = vcvt.f32.s32 %v2242
    %v2249 = vshll.u32 %v2248, 16
    %v2250 = vadd.s32 %v2249, %v2247
    %v2251 = vld [vmem:[%s6 + $0x2] sm:$0x1]
    %v2252 = vld [vmem:[%s6 + $0x3] sm:$0x1]
    %v2253 = vld [vmem:[%s0] sm:$0xff]
    %v2254 = vld [vmem:[%s1] sm:$0xff]
    %v2255 = vld [vmem:[%s1 + $0x8] sm:$0xff]
    %v2256 = vld [vmem:[%s1 + $0x10] sm:$0xff]
    %v2257 = vld [vmem:[%s1 + $0x18] sm:$0xff]
    %v2258 = vld [vmem:[%s1 + $0x20] sm:$0xff]
    %v2259 = vld [vmem:[%s1 + $0x28] sm:$0xff]
    %v2260 = vld [vmem:[%s1 + $0x30] sm:$0xff]
    %v2261 = vld [vmem:[%s1 + $0x38] sm:$0xff]
    %v2262 = vld [vmem:[%s1 + $0x40] sm:$0xff]
    %v2263 = vld [vmem:[%s1 + $0x48] sm:$0xff]
    %v2264 = vld [vmem:[%s1 + $0x50] sm:$0xff]
    %v2265 = vld [vmem:[%s1 + $0x58] sm:$0xff]
    %v2266 = vld [vmem:[%s1 + $0x60] sm:$0xff]
    %v2267 = vld [vmem:[%s1 + $0x68] sm:$0xff]
    %v2268 = vld [vmem:[%s1 + $0x70] sm:$0xff]
    %v2269 = vld [vmem:[%s1 + $0x78] sm:$0xff]
    %v2270 = vlaneseq
    %v2271 = vshrl.u32 %v2270, 7
    %v2272 = vsub.s32 0, %v2271
    %v2273 = vrot.slane %v2251, %v2272
    %2274 = vmatprep.subr.mxu0 0.0
    %2275 = vmatpush1.msra.mxu0 %v2254
    %2276 = vmatprep.subr.mxu0 0.0
    %2277 = vmatpush1.msra.mxu0 %v2255
    %2278 = vmatprep.subr.mxu0 0.0
    %2279 = vmatpush1.msra.mxu0 %v2256
    %2280 = vmatprep.subr.mxu0 0.0
    %2281 = vmatpush1.msra.mxu0 %v2257
    %2282 = vmatprep.subr.mxu0 0.0
    %2283 = vmatpush1.msra.mxu0 %v2258
    %2284 = vmatprep.subr.mxu0 0.0
    %2285 = vmatpush1.msra.mxu0 %v2259
    %2286 = vmatprep.subr.mxu0 0.0
    %2287 = vmatpush1.msra.mxu0 %v2260
    %2288 = vmatprep.subr.mxu0 0.0
    %2289 = vmatpush1.msra.mxu0 %v2261
    %2290 = vmatprep.subr.mxu0 0.0
    %2291 = vmatpush1.msra.mxu0 %v2262
    %2292 = vmatprep.subr.mxu0 0.0
    %2293 = vmatpush1.msra.mxu0 %v2263
    %2294 = vmatprep.subr.mxu0 0.0
    %2295 = vmatpush1.msra.mxu0 %v2264
    %2296 = vmatprep.subr.mxu0 0.0
    %2297 = vmatpush1.msra.mxu0 %v2265
    %2298 = vmatprep.subr.mxu0 0.0
    %2299 = vmatpush1.msra.mxu0 %v2266
    %2300 = vmatprep.subr.mxu0 0.0
    %2301 = vmatpush1.msra.mxu0 %v2267
    %2302 = vmatprep.subr.mxu0 0.0
    %2303 = vmatpush1.msra.mxu0 %v2268
    %2304 = vmatprep.subr.mxu0 0.0
    %2305 = vmatpush1.msra.mxu0 %v2269
    %2306 = vmatprep.subr.mxu0 0.0
    %2307 = vmatpush1.msra.mxu0 0.0
    %2308 = vmatprep.subr.mxu0 0.0
    %2309 = vmatpush1.msra.mxu0 0.0
    %2310 = vmatprep.subr.mxu0 0.0
    %2311 = vmatpush1.msra.mxu0 0.0
    %2312 = vmatprep.subr.mxu0 0.0
    %2313 = vmatpush1.msra.mxu0 0.0
    %2314 = vmatprep.subr.mxu0 0.0
    %2315 = vmatpush1.msra.mxu0 0.0
    %2316 = vmatprep.subr.mxu0 0.0
    %2317 = vmatpush1.msra.mxu0 0.0
    %2318 = vmatprep.subr.mxu0 0.0
    %2319 = vmatpush1.msra.mxu0 0.0
    %2320 = vmatprep.subr.mxu0 0.0
    %2321 = vmatpush1.msra.mxu0 0.0
    %2322 = vmatprep.subr.mxu0 0.0
    %2323 = vmatpush1.msra.mxu0 0.0
    %2324 = vmatprep.subr.mxu0 0.0
    %2325 = vmatpush1.msra.mxu0 0.0
    %2326 = vmatprep.subr.mxu0 0.0
    %2327 = vmatpush1.msra.mxu0 0.0
    %2328 = vmatprep.subr.mxu0 0.0
    %2329 = vmatpush1.msra.mxu0 0.0
    %2330 = vmatprep.subr.mxu0 0.0
    %2331 = vmatpush1.msra.mxu0 0.0
    %2332 = vmatprep.subr.mxu0 0.0
    %2333 = vmatpush1.msra.mxu0 0.0
    %2334 = vmatprep.subr.mxu0 0.0
    %2335 = vmatpush1.msra.mxu0 0.0
    %2336 = vmatprep.subr.mxu0 0.0
    %2337 = vmatpush1.msra.mxu0 0.0
    %2338 = vmatprep.mubr.f32.mxu0 0.0
    %2339 = vmatmul.mubr.f32.gmra.mrb[0].mxu0 %v2253
    %v2340 = vpop.f32.mrb[0].mxu0
    %v2341 = vadd.f32 %v2273, %v2340
    %v2342 = vpop.f32.mrb[0].mxu0
    %2343 = vdwg.mxu0
    %v2344 = vmax.f32 %v2341, 0.0
    %v2345 = vld [vmem:[%s2] sm:$0xff]
    %v2346 = vld [vmem:[%s2 + $0x8] sm:$0xff]
    %v2347 = vld [vmem:[%s2 + $0x10] sm:$0xff]
    %v2348 = vld [vmem:[%s2 + $0x18] sm:$0xff]
    %v2349 = vlaneseq
    %v2350 = vshrl.u32 %v2349, 7
    %v2351 = vsub.s32 0, %v2350
    %v2352 = vrot.slane %v2252, %v2351
    %vm2353 = vcmask 261120
    %v2355 = vsel %vm2353, %v2344, 0
    %2357 = vmatprep.subr.mxu0 0.0
    %2358 = vmatpush1.msra.mxu0 %v2345
    %2359 = vmatprep.subr.mxu0 0.0
    %2360 = vmatpush1.msra.mxu0 %v2346
    %2361 = vmatprep.subr.mxu0 0.0
    %2362 = vmatpush1.msra.mxu0 %v2347
    %2363 = vmatprep.subr.mxu0 0.0
    %2364 = vmatpush1.msra.mxu0 %v2348
    %2365 = vmatprep.subr.mxu0 0.0
    %2366 = vmatpush1.msra.mxu0 0.0
    %2367 = vmatprep.subr.mxu0 0.0
    %2368 = vmatpush1.msra.mxu0 0.0
    %2369 = vmatprep.subr.mxu0 0.0
    %2370 = vmatpush1.msra.mxu0 0.0
    %2371 = vmatprep.subr.mxu0 0.0
    %2372 = vmatpush1.msra.mxu0 0.0
    %2373 = vmatprep.subr.mxu0 0.0
    %2374 = vmatpush1.msra.mxu0 0.0
    %2375 = vmatprep.subr.mxu0 0.0
    %2376 = vmatpush1.msra.mxu0 0.0
    %2377 = vmatprep.subr.mxu0 0.0
    %2378 = vmatpush1.msra.mxu0 0.0
    %2379 = vmatprep.subr.mxu0 0.0
    %2380 = vmatpush1.msra.mxu0 0.0
    %2381 = vmatprep.subr.mxu0 0.0
    %2382 = vmatpush1.msra.mxu0 0.0
    %2383 = vmatprep.subr.mxu0 0.0
    %2384 = vmatpush1.msra.mxu0 0.0
    %2385 = vmatprep.subr.mxu0 0.0
    %2386 = vmatpush1.msra.mxu0 0.0
    %2387 = vmatprep.subr.mxu0 0.0
    %2388 = vmatpush1.msra.mxu0 0.0
    %2389 = vmatprep.subr.mxu0 0.0
    %2390 = vmatpush1.msra.mxu0 0.0
    %2391 = vmatprep.subr.mxu0 0.0
    %2392 = vmatpush1.msra.mxu0 0.0
    %2393 = vmatprep.subr.mxu0 0.0
    %2394 = vmatpush1.msra.mxu0 0.0
    %2395 = vmatprep.subr.mxu0 0.0
    %2396 = vmatpush1.msra.mxu0 0.0
    %2397 = vmatprep.subr.mxu0 0.0
    %2398 = vmatpush1.msra.mxu0 0.0
    %2399 = vmatprep.subr.mxu0 0.0
    %2400 = vmatpush1.msra.mxu0 0.0
    %2401 = vmatprep.subr.mxu0 0.0
    %2402 = vmatpush1.msra.mxu0 0.0
    %2403 = vmatprep.subr.mxu0 0.0
    %2404 = vmatpush1.msra.mxu0 0.0
    %2405 = vmatprep.subr.mxu0 0.0
    %2406 = vmatpush1.msra.mxu0 0.0
    %2407 = vmatprep.subr.mxu0 0.0
    %2408 = vmatpush1.msra.mxu0 0.0
    %2409 = vmatprep.subr.mxu0 0.0
    %2410 = vmatpush1.msra.mxu0 0.0
    %2411 = vmatprep.subr.mxu0 0.0
    %2412 = vmatpush1.msra.mxu0 0.0
    %2413 = vmatprep.subr.mxu0 0.0
    %2414 = vmatpush1.msra.mxu0 0.0
    %2415 = vmatprep.subr.mxu0 0.0
    %2416 = vmatpush1.msra.mxu0 0.0
    %2417 = vmatprep.subr.mxu0 0.0
    %2418 = vmatpush1.msra.mxu0 0.0
    %2419 = vmatprep.subr.mxu0 0.0
    %2420 = vmatpush1.msra.mxu0 0.0
    %2421 = vmatprep.mubr.f32.mxu0 0.0
    %2422 = vmatmul.mubr.f32.gmra.mrb[0].mxu0 %v2355
    %v2423 = vpop.f32.mrb[0].mxu0
    %v2424 = vadd.f32 %v2352, %v2423
    %v2425 = vpop.f32.mrb[0].mxu0
    %2426 = vdwg.mxu0
    %vm2427 = vcmask 15360
    %v2428 = vsel %vm2427, %v2424, -inf
    %2429 = vmax.xlane.f32.xlu0 %v2428
    %v2430 = vpop.xlane.xlu0 %2429
    %vm2431 = vcmp.eq.f32.partialorder %v2424, %v2430
    %v2432 = vsel %vm2431, %v2233, 2
    %v2433 = vsel %vm2427, %v2432, 2147483647
    %v2434 = vand.u32 %v2433, 65535
    %v2435 = vshra.s32 %v2433, 16
    %v2436 = vcvt.s32.f32 %v2434
    %v2437 = vcvt.s32.f32 %v2435
    %2438 = vmin.xlane.f32.xlu0 %v2437
    %v2439 = vpop.xlane.xlu0 %2438
    %vm2440 = vcmp.eq.f32.partialorder %v2437, %v2439
    %v2441 = vsel %vm2440, %v2436, inf
    %2442 = vmin.xlane.f32.xlu0 %v2441
    %v2443 = vpop.xlane.xlu0 %2442
    %v2444 = vcvt.f32.s32 %v2443
    %v2445 = vcvt.f32.s32 %v2439
    %v2446 = vshll.u32 %v2445, 16
    %v2447 = vadd.s32 %v2446, %v2444
    %vm2448 = vcmp.eq.s32.totalorder %v2447, 1
    %v2449 = vsel %vm2448, 11, %v2250
    %2450 = vst [vmem:[#allocation2] sm:$0xff] %v2449
    // Predicated region
    $region30: #{tpu_custom_call.1} parent=1 // pred_check
      _
    $region31: #{tpu_custom_call.1} parent=1 // pred_check_branch
      %2452 = sbr.rel (0) target = $region33
    $region32: #{tpu_custom_call.1} parent=1 // pred_region
      %s2454 = ssub.s32 128, 128
      %2455 = vsyncadd [#allocation3], %s2454
      %s2457 = sshll.u32 [#allocation2], 4
      %s2458 = int_to_ptr.vmem [resolvable:$true] %s2457
      %2460 = dma.vmem_to_hbm [thread:$0]  %s2458, 128, %s7, [#allocation3]
    $region33: #{tpu_custom_call.1} parent=1 // pred_fallthru
      _
    // Predicated region
    $region34: #{tpu_custom_call.1} parent=1 // pred_check
      _
    $region35: #{tpu_custom_call.1} parent=1 // pred_check_branch
      %2462 = sbr.rel (0) target = $region37
    $region36: #{tpu_custom_call.1} parent=1 // pred_region
      %2463 = dma.done [#allocation3], 128
    $region37: #{tpu_custom_call.1} parent=1 // pred_fallthru
      _
    %2464 = vsyncpa [#allocation3], 1

</llo_original>
